<compile_context>
chip_gen: v5e
topology: v5e:2x2
jax: 0.10.0
libtpu: 0.0.40
codegen_flags: <defaults>
</compile_context>

<pallas_src>
import jax
import jax.numpy as jnp
import numpy as np
from jax.experimental import pallas as pl
from jax.experimental.pallas import tpu as pltpu

LN_EPS = 1e-5
_INV_SQRT2 = 0.7071067811865476
_LANES = 128
_SUBLANES = 8


def _gelu_exact(x):
    # nn.GELU() default: 0.5 * x * (1 + erf(x / sqrt(2)))
    return 0.5 * x * (1.0 + jax.lax.erf(x * jnp.float32(_INV_SQRT2)))


def _round_up(v, m):
    return ((v + m - 1) // m) * m


def _pack_param_slab(torch_params, S, C, n):
    """Pack all layer parameters into one (rows, 128)-lane f32 slab.

    Every entry starts at a sublane-aligned (multiple of 8) row, column 0, so
    in-kernel static pl.ds views are clean aligned sub-tile loads.  Biases are
    pre-broadcast to their exact in-kernel add shapes and the channel-mix
    weights pre-transposed, so the kernel does no parameter reshaping at all.
    Runs once at __init__ (cached), not per forward call.
    """
    p = torch_params
    f32 = np.float32

    def np32(a):
        return np.asarray(a, dtype=f32)

    entries = [
        ("gamma", np.broadcast_to(np32(p["gamma"]).reshape(1, C), (S, C))),
        ("beta",  np.broadcast_to(np32(p["beta"]).reshape(1, C), (S, C))),
        ("b3",    np.broadcast_to(np32(p["b3"]).reshape(1, n), (S, n))),
        ("b4",    np.broadcast_to(np32(p["b4"]).reshape(1, C), (S, C))),
        ("w1",    np32(p["W1"])),        # (n, S)  token-mix layer 1
        ("w2",    np32(p["W2"])),        # (S, n)  token-mix layer 2
        ("w3t",   np32(p["W3"]).T),      # (C, n)  channel-mix layer 1 (pre-T)
        ("w4t",   np32(p["W4"]).T),      # (n, C)  channel-mix layer 2 (pre-T)
        ("b1c",   np.broadcast_to(np32(p["b1"]).reshape(n, 1), (n, C))),
        ("b2c",   np.broadcast_to(np32(p["b2"]).reshape(S, 1), (S, C))),
    ]

    lanes = _round_up(max(a.shape[1] for _, a in entries), _LANES)
    layout = {}
    row = 0
    for name, a in entries:
        layout[name] = (row, a.shape[0], a.shape[1])
        row = _round_up(row + a.shape[0], _SUBLANES)
    slab = np.zeros((row, lanes), f32)
    for name, a in entries:
        start, r, c = layout[name]
        slab[start:start + r, :c] = a
    return jnp.asarray(slab), layout


class MixerLayerPallas:
    """Pallas-TPU Mixer_Layer forward; parameters packed & cached at init."""

    def __init__(self, torch_params, patch_size=7, channel_dim=14):
        self.S = (28 // patch_size) ** 2
        self.C = channel_dim
        self.n = int(np.asarray(torch_params["W1"]).shape[0])
        self.slab, self.layout = _pack_param_slab(
            torch_params, self.S, self.C, self.n)
        self._fns = {}   # (B, dtype) -> jitted pallas callable

    # ---------------------------- kernel ---------------------------------
    def _make_kernel(self):
        S, C, n = self.S, self.C, self.n
        layout = self.layout
        inv_c = 1.0 / C

        def view(slab_ref, name):
            start, r, c = layout[name]
            return slab_ref[pl.ds(start, r), pl.ds(0, c)]

        def layer_norm(x, gamma_b, beta_b, ones_c):
            # Moments via MXU dots (XLU cross-lane reduces are the scarce
            # unit); two-pass centered variance for numerical safety.
            mean = jnp.dot(x, ones_c, preferred_element_type=jnp.float32)      # (S,1)
            xc = x - mean
            var = jnp.dot(xc * xc, ones_c, preferred_element_type=jnp.float32)  # (S,1)
            inv = jax.lax.rsqrt(var + jnp.float32(LN_EPS))
            return xc * inv * gamma_b + beta_b

        def kernel(x_ref, slab_ref, o_ref):
            x = x_ref[0]                                    # (S, C), one batch element
            gamma_b = view(slab_ref, "gamma")               # (S, C), shared by both LNs
            beta_b = view(slab_ref, "beta")                 # (S, C)
            ones_c = jnp.full((C, 1), inv_c, jnp.float32)   # 1/C reduction vector

            # LayerNorm #1 over channels.
            xn = layer_norm(x, gamma_b, beta_b, ones_c)

            # Token-mixing MLP in transposed form (no in-kernel transpose):
            #   h1^T = gelu(W1 @ xn + b1[:,None])   -> (n, C)
            #   xt^T = W2 @ h1^T + b2[:,None]       -> (S, C)
            h1t = _gelu_exact(
                jnp.dot(view(slab_ref, "w1"), xn,
                        preferred_element_type=jnp.float32)
                + view(slab_ref, "b1c"))
            xtt = (jnp.dot(view(slab_ref, "w2"), h1t,
                           preferred_element_type=jnp.float32)
                   + view(slab_ref, "b2c"))

            # Residual + LayerNorm #2 (same shared gamma/beta as the module).
            xskip = layer_norm(xn + xtt, gamma_b, beta_b, ones_c)

            # Channel-mixing MLP.
            h2 = _gelu_exact(
                jnp.dot(xskip, view(slab_ref, "w3t"),
                        preferred_element_type=jnp.float32)
                + view(slab_ref, "b3"))
            xc = (jnp.dot(h2, view(slab_ref, "w4t"),
                          preferred_element_type=jnp.float32)
                  + view(slab_ref, "b4"))

            o_ref[0] = (xskip + xc).astype(o_ref.dtype)

        return kernel

    # ------------------------- pallas_call builder ------------------------
    def _build(self, B, dtype, single_buffer_params):
        S, C = self.S, self.C
        slab_rows, slab_lanes = self.slab.shape
        kernel = self._make_kernel()

        slab_kwargs = {}
        if single_buffer_params:
            # Constant block index -> no benefit from double buffering.
            slab_kwargs["pipeline_mode"] = pl.Buffered(1)

        call = pl.pallas_call(
            kernel,
            out_shape=jax.ShapeDtypeStruct((B, S, C), dtype),
            grid=(B,),                              # one batch element per step
            in_specs=[
                pl.BlockSpec((1, S, C), lambda b: (b, 0, 0)),
                pl.BlockSpec((slab_rows, slab_lanes), lambda b: (0, 0),
                             **slab_kwargs),
            ],
            out_specs=pl.BlockSpec((1, S, C), lambda b: (b, 0, 0)),
            compiler_params=pltpu.CompilerParams(
                # Batch steps are independent -> v7x's 2nd TC gets used;
                # on 1-TC v5e/v6e the extra per-step cost (~0.35us) is noise.
                dimension_semantics=("parallel",)),
        )
        return jax.jit(call)

    # ------------------------------ forward -------------------------------
    def __call__(self, x):
        B, S, C = x.shape
        assert S == self.S and C == self.C, "shape mismatch with layer config"
        key = (B, x.dtype)
        fn = self._fns.get(key)
        if fn is None:
            try:
                fn = self._build(B, x.dtype, single_buffer_params=True)
                out = jax.block_until_ready(fn(x, self.slab))
                self._fns[key] = fn
                return out
            except Exception:
                # This JAX build rejected pl.Buffered(1) -> default buffering.
                fn = self._build(B, x.dtype, single_buffer_params=False)
                self._fns[key] = fn
        return fn(x, self.slab)


# ----------------------------- pure-JAX reference ---------------------------

def _layernorm_ref(x, gamma, beta):
    mean = jnp.mean(x, axis=-1, keepdims=True)
    var = jnp.mean(jnp.square(x - mean), axis=-1, keepdims=True)
    inv = jax.lax.rsqrt(var + jnp.float32(LN_EPS))
    return (x - mean) * inv * gamma + beta


def mixer_layer_ref(x, torch_params):
    """Follows the PyTorch forward literally (Dropout(p=0) == identity)."""
    p = torch_params

    def ln(y):
        return _layernorm_ref(y, p["gamma"], p["beta"])

    xn = ln(x)                                   # (B, S, C)
    xT = jnp.swapaxes(xn, 1, 2)                  # (B, C, S)
    h1 = _gelu_exact(xT @ p["W1"].T + p["b1"])   # Linear(token_dim, n)
    xt = h1 @ p["W2"].T + p["b2"]                # Linear(n, token_dim)
    xskip = ln(jnp.swapaxes(xT + xt, 1, 2))      # (B, S, C)
    h2 = _gelu_exact(xskip @ p["W3"].T + p["b3"])
    xc = h2 @ p["W4"].T + p["b4"]
    return xskip + xc


if __name__ == "__main__":
    # Module hyper-params: patch_size=7 -> token_dim = (28//7)**2 = 16,
    # channel_dim = 14 (hard-coded in the module), hidden_dim n = 32, batch = 2.
    patch_size = 7
    S = (28 // patch_size) ** 2      # token_dim = 16
    C = 14                           # channel_dim
    n = 32                           # hidden_dim
    B = 2

    key = jax.random.PRNGKey(0)
    keys = jax.random.split(key, 9)

    # Deterministic synthetic parameters (PyTorch Linear layout: weight (out, in)).
    torch_params = {
        "gamma": jnp.ones((1, C), jnp.float32),
        "beta": jnp.zeros((1, C), jnp.float32),
        "W1": 0.02 * jax.random.normal(keys[0], (n, S), jnp.float32),
        "b1": 0.01 * jax.random.normal(keys[1], (n,), jnp.float32),
        "W2": 0.02 * jax.random.normal(keys[2], (S, n), jnp.float32),
        "b2": 0.01 * jax.random.normal(keys[3], (S,), jnp.float32),
        "W3": 0.02 * jax.random.normal(keys[4], (n, C), jnp.float32),
        "b3": 0.01 * jax.random.normal(keys[5], (n,), jnp.float32),
        "W4": 0.02 * jax.random.normal(keys[6], (C, n), jnp.float32),
        "b4": 0.01 * jax.random.normal(keys[7], (C,), jnp.float32),
    }

    x = jax.random.normal(keys[8], (B, S, C), jnp.float32)

    layer = MixerLayerPallas(torch_params, patch_size=patch_size, channel_dim=C)

    out = jax.block_until_ready(layer(x))
    ref = jax.block_until_ready(mixer_layer_ref(x, torch_params))
    np.testing.assert_allclose(np.asarray(out), np.asarray(ref),
                               rtol=1e-5, atol=1e-5)

    # Second call exercises the cached (no re-layout, no rebuild) fast path.
    out2 = jax.block_until_ready(layer(x))
    np.testing.assert_allclose(np.asarray(out2), np.asarray(ref),
                               rtol=1e-5, atol=1e-5)

    print("KERNEL_OK")
</pallas_src>

<mosaic_0001>
module attributes {stable_mosaic.version = 11 : i64} {
  func.func @kernel(%arg0: i32, %arg1: memref<1x16x14xf32, #tpu.memory_space<vmem>>, %arg2: memref<208x128xf32, #tpu.memory_space<vmem>>, %arg3: memref<1x16x14xf32, #tpu.memory_space<vmem>>) attributes {dimension_semantics = [#tpu.dimension_semantics<parallel>], iteration_bounds = array<i64: 2>, scalar_prefetch = 0 : i64, scratch_operands = 0 : i64, tpu.core_type = #tpu.core_type<tc>, window_params = [{transform_indices = @transform_0, window_bounds = array<i64: 1, 16, 14>}, {pipeline_mode = #tpu.pipeline_mode<synchronous>, transform_indices = @transform_1, window_bounds = array<i64: 208, 128>}, {transform_indices = @transform_2, window_bounds = array<i64: 1, 16, 14>}]} {
    %c0 = arith.constant 0 : index
    %c0_0 = arith.constant 0 : index
    %c0_1 = arith.constant 0 : index
    %0 = vector.load %arg1[%c0, %c0_0, %c0_1] : memref<1x16x14xf32, #tpu.memory_space<vmem>>, vector<1x16x14xf32>
    %1 = vector.shape_cast %0 : vector<1x16x14xf32> to vector<16x14xf32>
    %c0_2 = arith.constant 0 : index
    %c0_3 = arith.constant 0 : index
    %2 = vector.load %arg2[%c0_2, %c0_3] : memref<208x128xf32, #tpu.memory_space<vmem>>, vector<16x14xf32>
    %c16 = arith.constant 16 : index
    %c0_4 = arith.constant 0 : index
    %3 = vector.load %arg2[%c16, %c0_4] : memref<208x128xf32, #tpu.memory_space<vmem>>, vector<16x14xf32>
    %cst = arith.constant 0.0714285746 : f32
    %4 = vector.broadcast %cst : f32 to vector<14x1xf32>
    %cst_5 = arith.constant dense<0.000000e+00> : vector<16x1xf32>
    %5 = tpu.matmul %1, %4, %cst_5 {dimension_numbers = #tpu.dot_dimension_numbers<[1], [0], [0], [1], [0, 0, 1, 1], [], []>} : vector<16x14xf32>, vector<14x1xf32>, vector<16x1xf32> -> vector<16x1xf32>
    %6 = vector.broadcast %5 : vector<16x1xf32> to vector<16x14xf32>
    %7 = arith.subf %1, %6 : vector<16x14xf32>
    %8 = arith.mulf %7, %7 : vector<16x14xf32>
    %cst_6 = arith.constant dense<0.000000e+00> : vector<16x1xf32>
    %9 = tpu.matmul %8, %4, %cst_6 {dimension_numbers = #tpu.dot_dimension_numbers<[1], [0], [0], [1], [0, 0, 1, 1], [], []>} : vector<16x14xf32>, vector<14x1xf32>, vector<16x1xf32> -> vector<16x1xf32>
    %cst_7 = arith.constant 9.99999974E-6 : f32
    %10 = vector.broadcast %cst_7 : f32 to vector<16x1xf32>
    %11 = arith.addf %9, %10 : vector<16x1xf32>
    %12 = math.rsqrt %11 : vector<16x1xf32>
    %13 = vector.broadcast %12 : vector<16x1xf32> to vector<16x14xf32>
    %14 = arith.mulf %7, %13 : vector<16x14xf32>
    %15 = arith.mulf %14, %2 : vector<16x14xf32>
    %16 = arith.addf %15, %3 : vector<16x14xf32>
    %c64 = arith.constant 64 : index
    %c0_8 = arith.constant 0 : index
    %17 = vector.load %arg2[%c64, %c0_8] : memref<208x128xf32, #tpu.memory_space<vmem>>, vector<32x16xf32>
    %cst_9 = arith.constant dense<0.000000e+00> : vector<32x14xf32>
    %18 = tpu.matmul %17, %16, %cst_9 {dimension_numbers = #tpu.dot_dimension_numbers<[1], [0], [0], [1], [0, 0, 1, 1], [], []>} : vector<32x16xf32>, vector<16x14xf32>, vector<32x14xf32> -> vector<32x14xf32>
    %c160 = arith.constant 160 : index
    %c0_10 = arith.constant 0 : index
    %19 = vector.load %arg2[%c160, %c0_10] : memref<208x128xf32, #tpu.memory_space<vmem>>, vector<32x14xf32>
    %20 = arith.addf %18, %19 : vector<32x14xf32>
    %cst_11 = arith.constant 5.000000e-01 : f32
    %21 = vector.broadcast %cst_11 : f32 to vector<32x14xf32>
    %22 = arith.mulf %21, %20 : vector<32x14xf32>
    %cst_12 = arith.constant 0.707106769 : f32
    %23 = vector.broadcast %cst_12 : f32 to vector<32x14xf32>
    %24 = arith.mulf %20, %23 : vector<32x14xf32>
    %25 = math.erf %24 : vector<32x14xf32>
    %cst_13 = arith.constant 1.000000e+00 : f32
    %26 = vector.broadcast %cst_13 : f32 to vector<32x14xf32>
    %27 = arith.addf %26, %25 : vector<32x14xf32>
    %28 = arith.mulf %22, %27 : vector<32x14xf32>
    %c96 = arith.constant 96 : index
    %c0_14 = arith.constant 0 : index
    %29 = vector.load %arg2[%c96, %c0_14] : memref<208x128xf32, #tpu.memory_space<vmem>>, vector<16x32xf32>
    %cst_15 = arith.constant dense<0.000000e+00> : vector<16x14xf32>
    %30 = tpu.matmul %29, %28, %cst_15 {dimension_numbers = #tpu.dot_dimension_numbers<[1], [0], [0], [1], [0, 0, 1, 1], [], []>} : vector<16x32xf32>, vector<32x14xf32>, vector<16x14xf32> -> vector<16x14xf32>
    %c192 = arith.constant 192 : index
    %c0_16 = arith.constant 0 : index
    %31 = vector.load %arg2[%c192, %c0_16] : memref<208x128xf32, #tpu.memory_space<vmem>>, vector<16x14xf32>
    %32 = arith.addf %30, %31 : vector<16x14xf32>
    %33 = arith.addf %16, %32 : vector<16x14xf32>
    %cst_17 = arith.constant dense<0.000000e+00> : vector<16x1xf32>
    %34 = tpu.matmul %33, %4, %cst_17 {dimension_numbers = #tpu.dot_dimension_numbers<[1], [0], [0], [1], [0, 0, 1, 1], [], []>} : vector<16x14xf32>, vector<14x1xf32>, vector<16x1xf32> -> vector<16x1xf32>
    %35 = vector.broadcast %34 : vector<16x1xf32> to vector<16x14xf32>
    %36 = arith.subf %33, %35 : vector<16x14xf32>
    %37 = arith.mulf %36, %36 : vector<16x14xf32>
    %cst_18 = arith.constant dense<0.000000e+00> : vector<16x1xf32>
    %38 = tpu.matmul %37, %4, %cst_18 {dimension_numbers = #tpu.dot_dimension_numbers<[1], [0], [0], [1], [0, 0, 1, 1], [], []>} : vector<16x14xf32>, vector<14x1xf32>, vector<16x1xf32> -> vector<16x1xf32>
    %cst_19 = arith.constant 9.99999974E-6 : f32
    %39 = vector.broadcast %cst_19 : f32 to vector<16x1xf32>
    %40 = arith.addf %38, %39 : vector<16x1xf32>
    %41 = math.rsqrt %40 : vector<16x1xf32>
    %42 = vector.broadcast %41 : vector<16x1xf32> to vector<16x14xf32>
    %43 = arith.mulf %36, %42 : vector<16x14xf32>
    %44 = arith.mulf %43, %2 : vector<16x14xf32>
    %45 = arith.addf %44, %3 : vector<16x14xf32>
    %c112 = arith.constant 112 : index
    %c0_20 = arith.constant 0 : index
    %46 = vector.load %arg2[%c112, %c0_20] : memref<208x128xf32, #tpu.memory_space<vmem>>, vector<14x32xf32>
    %cst_21 = arith.constant dense<0.000000e+00> : vector<16x32xf32>
    %47 = tpu.matmul %45, %46, %cst_21 {dimension_numbers = #tpu.dot_dimension_numbers<[1], [0], [0], [1], [0, 0, 1, 1], [], []>} : vector<16x14xf32>, vector<14x32xf32>, vector<16x32xf32> -> vector<16x32xf32>
    %c32 = arith.constant 32 : index
    %c0_22 = arith.constant 0 : index
    %48 = vector.load %arg2[%c32, %c0_22] : memref<208x128xf32, #tpu.memory_space<vmem>>, vector<16x32xf32>
    %49 = arith.addf %47, %48 : vector<16x32xf32>
    %cst_23 = arith.constant 5.000000e-01 : f32
    %50 = vector.broadcast %cst_23 : f32 to vector<16x32xf32>
    %51 = arith.mulf %50, %49 : vector<16x32xf32>
    %cst_24 = arith.constant 0.707106769 : f32
    %52 = vector.broadcast %cst_24 : f32 to vector<16x32xf32>
    %53 = arith.mulf %49, %52 : vector<16x32xf32>
    %54 = math.erf %53 : vector<16x32xf32>
    %cst_25 = arith.constant 1.000000e+00 : f32
    %55 = vector.broadcast %cst_25 : f32 to vector<16x32xf32>
    %56 = arith.addf %55, %54 : vector<16x32xf32>
    %57 = arith.mulf %51, %56 : vector<16x32xf32>
    %c128 = arith.constant 128 : index
    %c0_26 = arith.constant 0 : index
    %58 = vector.load %arg2[%c128, %c0_26] : memref<208x128xf32, #tpu.memory_space<vmem>>, vector<32x14xf32>
    %cst_27 = arith.constant dense<0.000000e+00> : vector<16x14xf32>
    %59 = tpu.matmul %57, %58, %cst_27 {dimension_numbers = #tpu.dot_dimension_numbers<[1], [0], [0], [1], [0, 0, 1, 1], [], []>} : vector<16x32xf32>, vector<32x14xf32>, vector<16x14xf32> -> vector<16x14xf32>
    %c48 = arith.constant 48 : index
    %c0_28 = arith.constant 0 : index
    %60 = vector.load %arg2[%c48, %c0_28] : memref<208x128xf32, #tpu.memory_space<vmem>>, vector<16x14xf32>
    %61 = arith.addf %59, %60 : vector<16x14xf32>
    %62 = arith.addf %45, %61 : vector<16x14xf32>
    %c0_29 = arith.constant 0 : index
    %c0_30 = arith.constant 0 : index
    %c0_31 = arith.constant 0 : index
    %63 = vector.load %arg3[%c0_29, %c0_30, %c0_31] : memref<1x16x14xf32, #tpu.memory_space<vmem>>, vector<1x16x14xf32>
    %64 = vector.shape_cast %63 : vector<1x16x14xf32> to vector<16x14xf32>
    %65 = vector.shape_cast %62 : vector<16x14xf32> to vector<1x16x14xf32>
    tpu.vector_store %arg3[%c0_29, %c0_30, %c0_31], %65 {strides = array<i32>} : memref<1x16x14xf32, #tpu.memory_space<vmem>>, vector<1x16x14xf32>,
    return
  }
  func.func @transform_0(%arg0: i32) -> (i32, i32, i32) {
    %c0_i32 = arith.constant 0 : i32
    %c0_i32_0 = arith.constant 0 : i32
    %c0_i32_1 = arith.constant 0 : i32
    return %arg0, %c0_i32, %c0_i32_0 : i32, i32, i32
  }
  func.func @transform_1(%arg0: i32) -> (i32, i32) {
    %c0_i32 = arith.constant 0 : i32
    %c0_i32_0 = arith.constant 0 : i32
    %c0_i32_1 = arith.constant 0 : i32
    return %c0_i32, %c0_i32_0 : i32, i32
  }
  func.func @transform_2(%arg0: i32) -> (i32, i32, i32) {
    %c0_i32 = arith.constant 0 : i32
    %c0_i32_0 = arith.constant 0 : i32
    %c0_i32_1 = arith.constant 0 : i32
    return %arg0, %c0_i32, %c0_i32_0 : i32, i32, i32
  }
}

module attributes {stable_mosaic.version = 11 : i64} {
  func.func @kernel(%arg0: i32, %arg1: memref<1x16x14xf32, #tpu.memory_space<vmem>>, %arg2: memref<208x128xf32, #tpu.memory_space<vmem>>, %arg3: memref<1x16x14xf32, #tpu.memory_space<vmem>>) attributes {dimension_semantics = [#tpu.dimension_semantics<parallel>], iteration_bounds = array<i64: 2>, scalar_prefetch = 0 : i64, scratch_operands = 0 : i64, tpu.core_type = #tpu.core_type<tc>, window_params = [{transform_indices = @transform_0, window_bounds = array<i64: 1, 16, 14>}, {pipeline_mode = #tpu.pipeline_mode<synchronous>, transform_indices = @transform_1, window_bounds = array<i64: 208, 128>}, {transform_indices = @transform_2, window_bounds = array<i64: 1, 16, 14>}]} {
    %c0 = arith.constant 0 : index
    %c0_0 = arith.constant 0 : index
    %c0_1 = arith.constant 0 : index
    %0 = vector.load %arg1[%c0, %c0_0, %c0_1] : memref<1x16x14xf32, #tpu.memory_space<vmem>>, vector<1x16x14xf32>
    %1 = vector.shape_cast %0 : vector<1x16x14xf32> to vector<16x14xf32>
    %c0_2 = arith.constant 0 : index
    %c0_3 = arith.constant 0 : index
    %2 = vector.load %arg2[%c0_2, %c0_3] : memref<208x128xf32, #tpu.memory_space<vmem>>, vector<16x14xf32>
    %c16 = arith.constant 16 : index
    %c0_4 = arith.constant 0 : index
    %3 = vector.load %arg2[%c16, %c0_4] : memref<208x128xf32, #tpu.memory_space<vmem>>, vector<16x14xf32>
    %cst = arith.constant 0.0714285746 : f32
    %4 = vector.broadcast %cst : f32 to vector<14x1xf32>
    %cst_5 = arith.constant dense<0.000000e+00> : vector<16x1xf32>
    %5 = tpu.matmul %1, %4, %cst_5 {dimension_numbers = #tpu.dot_dimension_numbers<[1], [0], [0], [1], [0, 0, 1, 1], [], []>} : vector<16x14xf32>, vector<14x1xf32>, vector<16x1xf32> -> vector<16x1xf32>
    %6 = vector.broadcast %5 : vector<16x1xf32> to vector<16x14xf32>
    %7 = arith.subf %1, %6 : vector<16x14xf32>
    %8 = arith.mulf %7, %7 : vector<16x14xf32>
    %cst_6 = arith.constant dense<0.000000e+00> : vector<16x1xf32>
    %9 = tpu.matmul %8, %4, %cst_6 {dimension_numbers = #tpu.dot_dimension_numbers<[1], [0], [0], [1], [0, 0, 1, 1], [], []>} : vector<16x14xf32>, vector<14x1xf32>, vector<16x1xf32> -> vector<16x1xf32>
    %cst_7 = arith.constant 9.99999974E-6 : f32
    %10 = vector.broadcast %cst_7 : f32 to vector<16x1xf32>
    %11 = arith.addf %9, %10 : vector<16x1xf32>
    %12 = math.rsqrt %11 : vector<16x1xf32>
    %13 = vector.broadcast %12 : vector<16x1xf32> to vector<16x14xf32>
    %14 = arith.mulf %7, %13 : vector<16x14xf32>
    %15 = arith.mulf %14, %2 : vector<16x14xf32>
    %16 = arith.addf %15, %3 : vector<16x14xf32>
    %c64 = arith.constant 64 : index
    %c0_8 = arith.constant 0 : index
    %17 = vector.load %arg2[%c64, %c0_8] : memref<208x128xf32, #tpu.memory_space<vmem>>, vector<32x16xf32>
    %cst_9 = arith.constant dense<0.000000e+00> : vector<32x14xf32>
    %18 = tpu.matmul %17, %16, %cst_9 {dimension_numbers = #tpu.dot_dimension_numbers<[1], [0], [0], [1], [0, 0, 1, 1], [], []>} : vector<32x16xf32>, vector<16x14xf32>, vector<32x14xf32> -> vector<32x14xf32>
    %c160 = arith.constant 160 : index
    %c0_10 = arith.constant 0 : index
    %19 = vector.load %arg2[%c160, %c0_10] : memref<208x128xf32, #tpu.memory_space<vmem>>, vector<32x14xf32>
    %20 = arith.addf %18, %19 : vector<32x14xf32>
    %cst_11 = arith.constant 5.000000e-01 : f32
    %21 = vector.broadcast %cst_11 : f32 to vector<32x14xf32>
    %22 = arith.mulf %21, %20 : vector<32x14xf32>
    %cst_12 = arith.constant 0.707106769 : f32
    %23 = vector.broadcast %cst_12 : f32 to vector<32x14xf32>
    %24 = arith.mulf %20, %23 : vector<32x14xf32>
    %25 = math.erf %24 : vector<32x14xf32>
    %cst_13 = arith.constant 1.000000e+00 : f32
    %26 = vector.broadcast %cst_13 : f32 to vector<32x14xf32>
    %27 = arith.addf %26, %25 : vector<32x14xf32>
    %28 = arith.mulf %22, %27 : vector<32x14xf32>
    %c96 = arith.constant 96 : index
    %c0_14 = arith.constant 0 : index
    %29 = vector.load %arg2[%c96, %c0_14] : memref<208x128xf32, #tpu.memory_space<vmem>>, vector<16x32xf32>
    %cst_15 = arith.constant dense<0.000000e+00> : vector<16x14xf32>
    %30 = tpu.matmul %29, %28, %cst_15 {dimension_numbers = #tpu.dot_dimension_numbers<[1], [0], [0], [1], [0, 0, 1, 1], [], []>} : vector<16x32xf32>, vector<32x14xf32>, vector<16x14xf32> -> vector<16x14xf32>
    %c192 = arith.constant 192 : index
    %c0_16 = arith.constant 0 : index
    %31 = vector.load %arg2[%c192, %c0_16] : memref<208x128xf32, #tpu.memory_space<vmem>>, vector<16x14xf32>
    %32 = arith.addf %30, %31 : vector<16x14xf32>
    %33 = arith.addf %16, %32 : vector<16x14xf32>
    %cst_17 = arith.constant dense<0.000000e+00> : vector<16x1xf32>
    %34 = tpu.matmul %33, %4, %cst_17 {dimension_numbers = #tpu.dot_dimension_numbers<[1], [0], [0], [1], [0, 0, 1, 1], [], []>} : vector<16x14xf32>, vector<14x1xf32>, vector<16x1xf32> -> vector<16x1xf32>
    %35 = vector.broadcast %34 : vector<16x1xf32> to vector<16x14xf32>
    %36 = arith.subf %33, %35 : vector<16x14xf32>
    %37 = arith.mulf %36, %36 : vector<16x14xf32>
    %cst_18 = arith.constant dense<0.000000e+00> : vector<16x1xf32>
    %38 = tpu.matmul %37, %4, %cst_18 {dimension_numbers = #tpu.dot_dimension_numbers<[1], [0], [0], [1], [0, 0, 1, 1], [], []>} : vector<16x14xf32>, vector<14x1xf32>, vector<16x1xf32> -> vector<16x1xf32>
    %cst_19 = arith.constant 9.99999974E-6 : f32
    %39 = vector.broadcast %cst_19 : f32 to vector<16x1xf32>
    %40 = arith.addf %38, %39 : vector<16x1xf32>
    %41 = math.rsqrt %40 : vector<16x1xf32>
    %42 = vector.broadcast %41 : vector<16x1xf32> to vector<16x14xf32>
    %43 = arith.mulf %36, %42 : vector<16x14xf32>
    %44 = arith.mulf %43, %2 : vector<16x14xf32>
    %45 = arith.addf %44, %3 : vector<16x14xf32>
    %c112 = arith.constant 112 : index
    %c0_20 = arith.constant 0 : index
    %46 = vector.load %arg2[%c112, %c0_20] : memref<208x128xf32, #tpu.memory_space<vmem>>, vector<14x32xf32>
    %cst_21 = arith.constant dense<0.000000e+00> : vector<16x32xf32>
    %47 = tpu.matmul %45, %46, %cst_21 {dimension_numbers = #tpu.dot_dimension_numbers<[1], [0], [0], [1], [0, 0, 1, 1], [], []>} : vector<16x14xf32>, vector<14x32xf32>, vector<16x32xf32> -> vector<16x32xf32>
    %c32 = arith.constant 32 : index
    %c0_22 = arith.constant 0 : index
    %48 = vector.load %arg2[%c32, %c0_22] : memref<208x128xf32, #tpu.memory_space<vmem>>, vector<16x32xf32>
    %49 = arith.addf %47, %48 : vector<16x32xf32>
    %cst_23 = arith.constant 5.000000e-01 : f32
    %50 = vector.broadcast %cst_23 : f32 to vector<16x32xf32>
    %51 = arith.mulf %50, %49 : vector<16x32xf32>
    %cst_24 = arith.constant 0.707106769 : f32
    %52 = vector.broadcast %cst_24 : f32 to vector<16x32xf32>
    %53 = arith.mulf %49, %52 : vector<16x32xf32>
    %54 = math.erf %53 : vector<16x32xf32>
    %cst_25 = arith.constant 1.000000e+00 : f32
    %55 = vector.broadcast %cst_25 : f32 to vector<16x32xf32>
    %56 = arith.addf %55, %54 : vector<16x32xf32>
    %57 = arith.mulf %51, %56 : vector<16x32xf32>
    %c128 = arith.constant 128 : index
    %c0_26 = arith.constant 0 : index
    %58 = vector.load %arg2[%c128, %c0_26] : memref<208x128xf32, #tpu.memory_space<vmem>>, vector<32x14xf32>
    %cst_27 = arith.constant dense<0.000000e+00> : vector<16x14xf32>
    %59 = tpu.matmul %57, %58, %cst_27 {dimension_numbers = #tpu.dot_dimension_numbers<[1], [0], [0], [1], [0, 0, 1, 1], [], []>} : vector<16x32xf32>, vector<32x14xf32>, vector<16x14xf32> -> vector<16x14xf32>
    %c48 = arith.constant 48 : index
    %c0_28 = arith.constant 0 : index
    %60 = vector.load %arg2[%c48, %c0_28] : memref<208x128xf32, #tpu.memory_space<vmem>>, vector<16x14xf32>
    %61 = arith.addf %59, %60 : vector<16x14xf32>
    %62 = arith.addf %45, %61 : vector<16x14xf32>
    %c0_29 = arith.constant 0 : index
    %c0_30 = arith.constant 0 : index
    %c0_31 = arith.constant 0 : index
    %63 = vector.load %arg3[%c0_29, %c0_30, %c0_31] : memref<1x16x14xf32, #tpu.memory_space<vmem>>, vector<1x16x14xf32>
    %64 = vector.shape_cast %63 : vector<1x16x14xf32> to vector<16x14xf32>
    %65 = vector.shape_cast %62 : vector<16x14xf32> to vector<1x16x14xf32>
    tpu.vector_store %arg3[%c0_29, %c0_30, %c0_31], %65 {strides = array<i32>} : memref<1x16x14xf32, #tpu.memory_space<vmem>>, vector<1x16x14xf32>,
    return
  }
  func.func @transform_0(%arg0: i32) -> (i32, i32, i32) {
    %c0_i32 = arith.constant 0 : i32
    %c0_i32_0 = arith.constant 0 : i32
    %c0_i32_1 = arith.constant 0 : i32
    return %arg0, %c0_i32, %c0_i32_0 : i32, i32, i32
  }
  func.func @transform_1(%arg0: i32) -> (i32, i32) {
    %c0_i32 = arith.constant 0 : i32
    %c0_i32_0 = arith.constant 0 : i32
    %c0_i32_1 = arith.constant 0 : i32
    return %c0_i32, %c0_i32_0 : i32, i32
  }
  func.func @transform_2(%arg0: i32) -> (i32, i32, i32) {
    %c0_i32 = arith.constant 0 : i32
    %c0_i32_0 = arith.constant 0 : i32
    %c0_i32_1 = arith.constant 0 : i32
    return %arg0, %c0_i32, %c0_i32_0 : i32, i32, i32
  }
}

</mosaic_0001>

<llo_original>
// kernel: tpu_custom_call.1
$region0: #{tpu_custom_call.1}
  #allocation0 [shape = 'u32[]', space=smem, size = 0x4, offset = 0x4, fixed_abs, tag = 'smem constant byte address 0x4 - core index']
  #allocation1 [shape = 'u32[72,128]{1,0:T(1,128)}', space=vmem, size = 0x9000, scoped, tag = 'internal scratch']
  %s0 = inlined_call_operand.vmem [shape: f32[2,16,14], index: 0, kind: input, shape index: {}]
  %s1 = inlined_call_operand.hbm [shape: f32[208,128], index: 1, kind: input, shape index: {}]
  %s2 = inlined_call_operand.vmem [shape: f32[2,16,14], index: 2, kind: output, shape index: {}]
  %s3 = sld [smem:[#allocation0]]
  $region45: #{tpu_custom_call.1} parent=0
    _
  %s5 = ssub.s32 1, %s3
  %s6 = scalar_select 0, %s5, %s3
  $region1: #{tpu_custom_call.1} parent=0
    #allocation2 [shape = 'u8[106496]{0}', space=vmem, size = 0x1a000, scoped, tag = 'input window, operand 1, single buffered']
    #allocation3 [shape = 's32[2]{0}', space=sflag, size = 0x8, scoped, tag = 'scoped memory for tpu_custom_call.1']
    %7 = vsyncpa [#allocation3], 0
    loop: start=0, step=1, limit=4
    $region2: #{tpu_custom_call.1} parent=1 // loop_pre_header
      _
    $region3: #{tpu_custom_call.1} parent=1 // loop_header
      %s9 = sphi 0, %s13
      %p10 = scmp.ge.s32.totalorder %s9, 4
      %s19 = sphi 0, %s21
      %s22 = sphi 0, %s19
      %s23 = sphi 0, %s22
      %s39 = sphi 0, %s23
      %s43 = sphi 0, %s43
      %s45 = sphi 0, %s43
      %s46 = sphi 0, %s45
      %s60 = sphi 0, %s46
      %s66 = sphi 0, %s68
      %s69 = sphi 0, %s66
      %s70 = sphi 0, %s69
      %s86 = sphi 0, %s70
    $region4: #{tpu_custom_call.1} parent=1 // loop_header_branch
      %12 = sbr.rel (%p10) target = $region8
    $region5: #{tpu_custom_call.1} parent=1 // loop_body
      %s14 = ssub.s32 %s9, 1
      %s15 = ssub.s32 %s9, 2
      %s16 = sadd.s32 %s9, 1
      %s17 = ssub.s32 %s9, %s16
      %p18 = scmp.eq.s32.totalorder %s17, 0
      %s20 = sadd.s32 %s19, 1
      %s21 = scalar_select %p18, %s19, %s20
      %p24 = pneg %p18
      %p25 = scmp.eq.s32.totalorder %s9, 1
      %p26 = por %p24, %p25
      %p27 = scmp.ne.s32.totalorder %s19, %s22
      %p28 = scmp.eq.s32.totalorder %s9, 0
      %p29 = por %p27, %p28
      %p30 = scmp.ne.s32.totalorder %s19, %s22
      %p31 = scmp.eq.s32.totalorder %s14, 1
      %p32 = por %p30, %p31
      %p33 = scmp.ne.s32.totalorder %s22, %s23
      %p34 = scmp.eq.s32.totalorder %s14, 0
      %p35 = por %p33, %p34
      %p36 = scmp.ne.s32.totalorder %s22, %s23
      %p37 = scmp.eq.s32.totalorder %s15, 1
      %p38 = por %p36, %p37
      %p40 = scmp.ne.s32.totalorder %s23, %s39
      %p41 = scmp.eq.s32.totalorder %s15, 0
      %p42 = por %p40, %p41
      %s44 = sadd.s32 %s43, 1
      %p47 = scmp.eq.s32.totalorder %s9, 1
      %p48 = scmp.ne.s32.totalorder %s43, %s45
      %p49 = scmp.eq.s32.totalorder %s9, 0
      %p50 = por %p48, %p49
      %p51 = scmp.ne.s32.totalorder %s43, %s45
      %p52 = scmp.eq.s32.totalorder %s14, 1
      %p53 = por %p51, %p52
      %p54 = scmp.ne.s32.totalorder %s45, %s46
      %p55 = scmp.eq.s32.totalorder %s14, 0
      %p56 = por %p54, %p55
      %p57 = scmp.ne.s32.totalorder %s45, %s46
      %p58 = scmp.eq.s32.totalorder %s15, 1
      %p59 = por %p57, %p58
      %p61 = scmp.ne.s32.totalorder %s46, %s60
      %p62 = scmp.eq.s32.totalorder %s15, 0
      %p63 = por %p61, %p62
      %s64 = ssub.s32 %s9, %s16
      %p65 = scmp.eq.s32.totalorder %s64, 0
      %s67 = sadd.s32 %s66, 1
      %s68 = scalar_select %p65, %s66, %s67
      %p71 = pneg %p65
      %p72 = scmp.eq.s32.totalorder %s9, 1
      %p73 = por %p71, %p72
      %p74 = scmp.ne.s32.totalorder %s66, %s69
      %p75 = scmp.eq.s32.totalorder %s9, 0
      %p76 = por %p74, %p75
      %p77 = scmp.ne.s32.totalorder %s66, %s69
      %p78 = scmp.eq.s32.totalorder %s14, 1
      %p79 = por %p77, %p78
      %p80 = scmp.ne.s32.totalorder %s69, %s70
      %p81 = scmp.eq.s32.totalorder %s14, 0
      %p82 = por %p80, %p81
      %p83 = scmp.ne.s32.totalorder %s69, %s70
      %p84 = scmp.eq.s32.totalorder %s15, 1
      %p85 = por %p83, %p84
      %p87 = scmp.ne.s32.totalorder %s70, %s86
      %p88 = scmp.eq.s32.totalorder %s15, 0
      %p89 = por %p87, %p88
      %p90 = scmp.le.s32.totalorder 1, %s9
      %p91 = scmp.lt.s32.totalorder %s9, 3
      %p92 = pnand %p90, %p91
      %p93 = pneg %p92
      // Predicated region
      $region9: #{tpu_custom_call.1} parent=5 // pred_check
        _
      $region10: #{tpu_custom_call.1} parent=5 // pred_check_branch
        %95 = sbr.rel (%p92) target = $region12
      $region11: #{tpu_custom_call.1} parent=5 // pred_region
        %s96 = ssub.s32 %s9, 1
        // Predicated region
        $region13: #{tpu_custom_call.1} parent=11 // pred_check
          %p97 = pneg %p56
        $region14: #{tpu_custom_call.1} parent=11 // pred_check_branch
          %99 = sbr.rel (%p97) target = $region16
        $region15: #{tpu_custom_call.1} parent=11 // pred_region
          %101 = vsyncadd [#allocation3], 0
          %s102 = sshll.u32 %s1, 4
          %s103 = int_to_ptr.hbm [resolvable:$true] %s102
          %s104 = sshll.u32 [#allocation2], 4
          %s105 = int_to_ptr.vmem [resolvable:$true] %s104
          %110 = dma.hbm_to_vmem [thread:$0]  %s103, 3328, %s105, [#allocation3], 128, 128, 8
        $region16: #{tpu_custom_call.1} parent=11 // pred_fallthru
          _
      $region12: #{tpu_custom_call.1} parent=5 // pred_fallthru
        _
      %p111 = scmp.lt.s32.totalorder %s9, 2
      // Predicated region
      $region17: #{tpu_custom_call.1} parent=5 // pred_check
        %p112 = pneg %p111
      $region18: #{tpu_custom_call.1} parent=5 // pred_check_branch
        %114 = sbr.rel (%p112) target = $region20
      $region19: #{tpu_custom_call.1} parent=5 // pred_region
        // Predicated region
        $region21: #{tpu_custom_call.1} parent=19 // pred_check
          %p115 = pneg %p29
        $region22: #{tpu_custom_call.1} parent=19 // pred_check_branch
          %117 = sbr.rel (%p115) target = $region24
        $region23: #{tpu_custom_call.1} parent=19 // pred_region
          %p118 = scmp.lt.s32.totalorder %s9, 1
          %s119 = scalar_select %p118, %s9, 1
          %s120 = smul.addr %s119, 2
          %s121 = smul.addr %s120, 8
          %s122 = scalar_lea.vmem %s0, %s121
        $region24: #{tpu_custom_call.1} parent=19 // pred_fallthru
          _
      $region20: #{tpu_custom_call.1} parent=5 // pred_fallthru
        _
      %p123 = scmp.le.s32.totalorder 1, %s9
      %p124 = scmp.lt.s32.totalorder %s9, 3
      %p125 = pnand %p123, %p124
      %p126 = pneg %p125
      // Predicated region
      $region25: #{tpu_custom_call.1} parent=5 // pred_check
        _
      $region26: #{tpu_custom_call.1} parent=5 // pred_check_branch
        %128 = sbr.rel (%p125) target = $region28
      $region27: #{tpu_custom_call.1} parent=5 // pred_region
        %s129 = ssub.s32 %s9, 1
        // Predicated region
        $region29: #{tpu_custom_call.1} parent=27 // pred_check
          %p130 = pneg %p56
        $region30: #{tpu_custom_call.1} parent=27 // pred_check_branch
          %132 = sbr.rel (%p130) target = $region32
        $region31: #{tpu_custom_call.1} parent=27 // pred_region
          %134 = dma.done [#allocation3], 3328
        $region32: #{tpu_custom_call.1} parent=27 // pred_fallthru
          _
        %p135 = scmp.lt.s32.totalorder %s14, 1
        %s136 = scalar_select %p135, %s14, 1
        %s137 = smul.addr %s136, 2
        %s138 = smul.addr %s137, 8
        %s139 = scalar_lea.vmem %s0, %s138
        %p140 = pneg %p35
        %p141 = pneg %p32
        %p142 = pneg %p56
        %p143 = pneg %p53
        %p144 = pneg %p82
        %p145 = pneg %p79
        %p146 = scmp.lt.s32.totalorder %s14, 1
        %s147 = scalar_select %p146, %s14, 1
        %s148 = smul.addr %s147, 2
        %s149 = smul.addr %s148, 8
        %s150 = scalar_lea.vmem %s2, %s149
        %p151 = scmp.lt.s32.totalorder %s14, 1
        %s152 = scalar_select %p151, %s14, 1
        %s153 = smul.addr %s152, 2
        %s154 = smul.addr %s153, 8
        %s155 = scalar_lea.vmem %s0, %s154
        %p156 = scmp.lt.s32.totalorder %s14, 1
        %s157 = scalar_select %p156, %s14, 1
        %s158 = smul.addr %s157, 2
        %s159 = smul.addr %s158, 8
        %s160 = scalar_lea.vmem %s2, %s159
        %v161 = vld [vmem:[%s155] sm:$0xff]
        %v162 = vld [vmem:[%s155 + $0x8] sm:$0xff]
        %v163 = vld [vmem:[#allocation2] sm:$0xff]
        %v164 = vld [vmem:[#allocation2 + $0x8] sm:$0xff]
        %v165 = vld [vmem:[#allocation2 + $0x10] sm:$0xff]
        %v166 = vld [vmem:[#allocation2 + $0x18] sm:$0xff]
        %vm167 = vcmask 113664
        %v169 = vsel %vm167, %v161, 0
        %v172 = vsel %vm167, %v162, 0
        %vm174 = vcmask 1045504
        %v176 = vsel %vm174, 0.071428575, 0
        %178 = vmatpush.msra.mxu0 0.0
        %179 = vmatpush.msra.mxu0 0.0
        %180 = vmatpush.msra.mxu0 0.0
        %181 = vmatpush.msra.mxu0 0.0
        %182 = vmatpush.msra.mxu0 0.0
        %183 = vmatpush.msra.mxu0 0.0
        %184 = vmatpush.msra.mxu0 0.0
        %185 = vmatpush.msra.mxu0 0.0
        %186 = vmatpush.msra.mxu0 0.0
        %187 = vmatpush.msra.mxu0 0.0
        %188 = vmatpush.msra.mxu0 0.0
        %189 = vmatpush.msra.mxu0 0.0
        %190 = vmatpush.msra.mxu0 0.0
        %191 = vmatpush.msra.mxu0 0.0
        %192 = vmatpush.msra.mxu0 %v176
        %193 = vmatpush.msra.mxu0 0.071428575
        %194 = vmatmul.f32.gmra.mxu0 %v169
        %v195 = vpop.f32.mrf.mxu0
        %v196 = vadd.f32 0.0, %v195
        %197 = vmatmul.f32.gmra.mxu0 %v172
        %v198 = vpop.f32.mrf.mxu0
        %v199 = vadd.f32 0.0, %v198
        %200 = vdwg.mxu0
        %202 = vset.pattern.permute.xlu0 0
        %203 = vperm.xlu0 %202, %v196
        %v204 = vpop.permute.xlu0 %203
        %207 = vset.pattern.permute.xlu0 0
        %208 = vperm.xlu0 %207, %v199
        %v209 = vpop.permute.xlu0 %208
        %v211 = vsub.f32 %v161, %v204
        %v212 = vsub.f32 %v162, %v209
        %v213 = vmul.f32 %v211, %v211
        %v214 = vmul.f32 %v212, %v212
        %v216 = vsel %vm167, %v213, 0
        %v219 = vsel %vm167, %v214, 0
        %221 = vmatpush.msra.mxu0 0.0
        %222 = vmatpush.msra.mxu0 0.0
        %223 = vmatpush.msra.mxu0 0.0
        %224 = vmatpush.msra.mxu0 0.0
        %225 = vmatpush.msra.mxu0 0.0
        %226 = vmatpush.msra.mxu0 0.0
        %227 = vmatpush.msra.mxu0 0.0
        %228 = vmatpush.msra.mxu0 0.0
        %229 = vmatpush.msra.mxu0 0.0
        %230 = vmatpush.msra.mxu0 0.0
        %231 = vmatpush.msra.mxu0 0.0
        %232 = vmatpush.msra.mxu0 0.0
        %233 = vmatpush.msra.mxu0 0.0
        %234 = vmatpush.msra.mxu0 0.0
        %235 = vmatpush.msra.mxu0 %v176
        %236 = vmatpush.msra.mxu0 0.071428575
        %237 = vmatmul.f32.gmra.mxu0 %v216
        %v238 = vpop.f32.mrf.mxu0
        %v239 = vadd.f32 1e-05, %v238
        %240 = vmatmul.f32.gmra.mxu0 %v219
        %v241 = vpop.f32.mrf.mxu0
        %v242 = vadd.f32 1e-05, %v241
        %243 = vdwg.mxu0
        %v244 = vrsqrt.pop %v239
        %v245 = vmul.f32 %v244, %v239
        %v246 = vmul.f32 %v245, %v244
        %v247 = vmul.f32 0.5, %v246
        %v248 = vsub.f32 1.5, %v247
        %v249 = vmul.f32 %v244, %v248
        %vm250 = vweird.f32 %v239
        %vm251 = vweird.f32 %v244
        %vm252 = vmor %vm250, %vm251
        %v253 = vsel %vm252, %v244, %v249
        %v254 = vrsqrt.pop %v242
        %v255 = vmul.f32 %v254, %v242
        %v256 = vmul.f32 %v255, %v254
        %v257 = vmul.f32 0.5, %v256
        %v258 = vsub.f32 1.5, %v257
        %v259 = vmul.f32 %v254, %v258
        %vm260 = vweird.f32 %v242
        %vm261 = vweird.f32 %v254
        %vm262 = vmor %vm260, %vm261
        %v263 = vsel %vm262, %v254, %v259
        %265 = vset.pattern.permute.xlu0 0
        %266 = vperm.xlu0 %265, %v253
        %v267 = vpop.permute.xlu0 %266
        %270 = vset.pattern.permute.xlu0 0
        %271 = vperm.xlu0 %270, %v263
        %v272 = vpop.permute.xlu0 %271
        %v274 = vmul.f32 %v211, %v267
        %v275 = vmul.f32 %v212, %v272
        %v276 = vmul.f32 %v274, %v163
        %v277 = vmul.f32 %v275, %v164
        %v278 = vadd.f32 %v276, %v165
        %v279 = vadd.f32 %v277, %v166
        %v280 = vld [vmem:[#allocation2 + $0x40] sm:$0xff]
        %v281 = vld [vmem:[#allocation2 + $0x48] sm:$0xff]
        %v282 = vld [vmem:[#allocation2 + $0x50] sm:$0xff]
        %v283 = vld [vmem:[#allocation2 + $0x58] sm:$0xff]
        %v284 = vld [vmem:[#allocation2 + $0xa0] sm:$0xff]
        %v285 = vld [vmem:[#allocation2 + $0xa8] sm:$0xff]
        %v286 = vld [vmem:[#allocation2 + $0xb0] sm:$0xff]
        %v287 = vld [vmem:[#allocation2 + $0xb8] sm:$0xff]
        %vm288 = vcmask 130048
        %v290 = vsel %vm288, %v280, 0
        %v293 = vsel %vm288, %v281, 0
        %v296 = vsel %vm288, %v282, 0
        %v299 = vsel %vm288, %v283, 0
        %301 = vmatpush.msra.mxu0 0.0
        %302 = vmatpush.msra.mxu0 0.0
        %303 = vmatpush.msra.mxu0 0.0
        %304 = vmatpush.msra.mxu0 0.0
        %305 = vmatpush.msra.mxu0 0.0
        %306 = vmatpush.msra.mxu0 0.0
        %307 = vmatpush.msra.mxu0 0.0
        %308 = vmatpush.msra.mxu0 0.0
        %309 = vmatpush.msra.mxu0 0.0
        %310 = vmatpush.msra.mxu0 0.0
        %311 = vmatpush.msra.mxu0 0.0
        %312 = vmatpush.msra.mxu0 0.0
        %313 = vmatpush.msra.mxu0 0.0
        %314 = vmatpush.msra.mxu0 0.0
        %315 = vmatpush.msra.mxu0 %v279
        %316 = vmatpush.msra.mxu0 %v278
        %317 = vmatmul.f32.gmra.mxu0 %v290
        %v318 = vpop.f32.mrf.mxu0
        %v319 = vadd.f32 %v284, %v318
        %320 = vmatmul.f32.gmra.mxu0 %v293
        %v321 = vpop.f32.mrf.mxu0
        %v322 = vadd.f32 %v285, %v321
        %323 = vmatmul.f32.gmra.mxu0 %v296
        %v324 = vpop.f32.mrf.mxu0
        %v325 = vadd.f32 %v286, %v324
        %326 = vmatmul.f32.gmra.mxu0 %v299
        %v327 = vpop.f32.mrf.mxu0
        %v328 = vadd.f32 %v287, %v327
        %329 = vdwg.mxu0
        %v330 = vmul.f32 %v319, 0.5
        %v331 = vmul.f32 %v322, 0.5
        %v332 = vmul.f32 %v325, 0.5
        %v333 = vmul.f32 %v328, 0.5
        %v334 = vmul.f32 %v319, 0.70710677
        %v335 = vmul.f32 %v322, 0.70710677
        %v336 = vmul.f32 %v325, 0.70710677
        %v337 = vmul.f32 %v328, 0.70710677
        %v338 = vmul.f32 %v334, %v334
        %v339 = vmin.f32 16.0, %v338
        %v340 = vmul.f32 %v339, 2.1237322e-06
        %v341 = vadd.f32 %v340, 0.00028619796
        %v342 = vmul.f32 %v339, %v341
        %v343 = vadd.f32 %v342, 0.0036580483
        %v344 = vmul.f32 %v339, %v343
        %v345 = vadd.f32 %v344, 0.05243302
        %v346 = vmul.f32 %v339, %v345
        %v347 = vadd.f32 %v346, 0.18741608
        %v348 = vmul.f32 %v339, %v347
        %v349 = vadd.f32 %v348, 1.1283791
        %v350 = vmul.f32 %v334, %v349
        %v351 = vmul.f32 %v339, 3.8918573e-05
        %v352 = vadd.f32 %v351, 0.001143296
        %v353 = vmul.f32 %v339, %v352
        %v354 = vadd.f32 %v353, 0.014752088
        %v355 = vmul.f32 %v339, %v354
        %v356 = vadd.f32 %v355, 0.112945676
        %v357 = vmul.f32 %v339, %v356
        %v358 = vadd.f32 %v357, 0.4994258
        %v359 = vmul.f32 %v339, %v358
        %v360 = vadd.f32 %v359, 1.0
        %v361 = vrcp.pop %v360
        %v362 = vmul.f32 %v360, %v361
        %v363 = vsub.f32 1.0, %v362
        %v364 = vmul.f32 %v361, %v363
        %v365 = vadd.f32 %v361, %v364
        %vm366 = vweird.f32 %v360
        %vm367 = vweird.f32 %v361
        %vm368 = vmor %vm366, %vm367
        %v369 = vsel %vm368, %v361, %v365
        %v370 = vand.u32 2147483647, %v360
        %vm371 = vcmp.eq.f32.partialorder %v370, 8.507059e+37
        %v372 = vand.u32 %v360, 2147483648
        %v373 = vor.u32 1.1754944e-38, %v372
        %v374 = vsel %vm371, %v373, %v369
        %v375 = vmul.f32 %v350, %v374
        %v376 = vmin.f32 %v375, 1.0
        %v377 = vmax.f32 %v376, -1.0
        %v378 = vmul.f32 %v335, %v335
        %v379 = vmin.f32 16.0, %v378
        %v380 = vmul.f32 %v379, 2.1237322e-06
        %v381 = vadd.f32 %v380, 0.00028619796
        %v382 = vmul.f32 %v379, %v381
        %v383 = vadd.f32 %v382, 0.0036580483
        %v384 = vmul.f32 %v379, %v383
        %v385 = vadd.f32 %v384, 0.05243302
        %v386 = vmul.f32 %v379, %v385
        %v387 = vadd.f32 %v386, 0.18741608
        %v388 = vmul.f32 %v379, %v387
        %v389 = vadd.f32 %v388, 1.1283791
        %v390 = vmul.f32 %v335, %v389
        %v391 = vmul.f32 %v379, 3.8918573e-05
        %v392 = vadd.f32 %v391, 0.001143296
        %v393 = vmul.f32 %v379, %v392
        %v394 = vadd.f32 %v393, 0.014752088
        %v395 = vmul.f32 %v379, %v394
        %v396 = vadd.f32 %v395, 0.112945676
        %v397 = vmul.f32 %v379, %v396
        %v398 = vadd.f32 %v397, 0.4994258
        %v399 = vmul.f32 %v379, %v398
        %v400 = vadd.f32 %v399, 1.0
        %v401 = vrcp.pop %v400
        %v402 = vmul.f32 %v400, %v401
        %v403 = vsub.f32 1.0, %v402
        %v404 = vmul.f32 %v401, %v403
        %v405 = vadd.f32 %v401, %v404
        %vm406 = vweird.f32 %v400
        %vm407 = vweird.f32 %v401
        %vm408 = vmor %vm406, %vm407
        %v409 = vsel %vm408, %v401, %v405
        %v410 = vand.u32 2147483647, %v400
        %vm411 = vcmp.eq.f32.partialorder %v410, 8.507059e+37
        %v412 = vand.u32 %v400, 2147483648
        %v413 = vor.u32 1.1754944e-38, %v412
        %v414 = vsel %vm411, %v413, %v409
        %v415 = vmul.f32 %v390, %v414
        %v416 = vmin.f32 %v415, 1.0
        %v417 = vmax.f32 %v416, -1.0
        %v418 = vmul.f32 %v336, %v336
        %v419 = vmin.f32 16.0, %v418
        %v420 = vmul.f32 %v419, 2.1237322e-06
        %v421 = vadd.f32 %v420, 0.00028619796
        %v422 = vmul.f32 %v419, %v421
        %v423 = vadd.f32 %v422, 0.0036580483
        %v424 = vmul.f32 %v419, %v423
        %v425 = vadd.f32 %v424, 0.05243302
        %v426 = vmul.f32 %v419, %v425
        %v427 = vadd.f32 %v426, 0.18741608
        %v428 = vmul.f32 %v419, %v427
        %v429 = vadd.f32 %v428, 1.1283791
        %v430 = vmul.f32 %v336, %v429
        %v431 = vmul.f32 %v419, 3.8918573e-05
        %v432 = vadd.f32 %v431, 0.001143296
        %v433 = vmul.f32 %v419, %v432
        %v434 = vadd.f32 %v433, 0.014752088
        %v435 = vmul.f32 %v419, %v434
        %v436 = vadd.f32 %v435, 0.112945676
        %v437 = vmul.f32 %v419, %v436
        %v438 = vadd.f32 %v437, 0.4994258
        %v439 = vmul.f32 %v419, %v438
        %v440 = vadd.f32 %v439, 1.0
        %v441 = vrcp.pop %v440
        %v442 = vmul.f32 %v440, %v441
        %v443 = vsub.f32 1.0, %v442
        %v444 = vmul.f32 %v441, %v443
        %v445 = vadd.f32 %v441, %v444
        %vm446 = vweird.f32 %v440
        %vm447 = vweird.f32 %v441
        %vm448 = vmor %vm446, %vm447
        %v449 = vsel %vm448, %v441, %v445
        %v450 = vand.u32 2147483647, %v440
        %vm451 = vcmp.eq.f32.partialorder %v450, 8.507059e+37
        %v452 = vand.u32 %v440, 2147483648
        %v453 = vor.u32 1.1754944e-38, %v452
        %v454 = vsel %vm451, %v453, %v449
        %v455 = vmul.f32 %v430, %v454
        %v456 = vmin.f32 %v455, 1.0
        %v457 = vmax.f32 %v456, -1.0
        %v458 = vmul.f32 %v337, %v337
        %v459 = vmin.f32 16.0, %v458
        %v460 = vmul.f32 %v459, 2.1237322e-06
        %v461 = vadd.f32 %v460, 0.00028619796
        %v462 = vmul.f32 %v459, %v461
        %v463 = vadd.f32 %v462, 0.0036580483
        %v464 = vmul.f32 %v459, %v463
        %v465 = vadd.f32 %v464, 0.05243302
        %v466 = vmul.f32 %v459, %v465
        %v467 = vadd.f32 %v466, 0.18741608
        %v468 = vmul.f32 %v459, %v467
        %v469 = vadd.f32 %v468, 1.1283791
        %v470 = vmul.f32 %v337, %v469
        %v471 = vmul.f32 %v459, 3.8918573e-05
        %v472 = vadd.f32 %v471, 0.001143296
        %v473 = vmul.f32 %v459, %v472
        %v474 = vadd.f32 %v473, 0.014752088
        %v475 = vmul.f32 %v459, %v474
        %v476 = vadd.f32 %v475, 0.112945676
        %v477 = vmul.f32 %v459, %v476
        %v478 = vadd.f32 %v477, 0.4994258
        %v479 = vmul.f32 %v459, %v478
        %v480 = vadd.f32 %v479, 1.0
        %v481 = vrcp.pop %v480
        %v482 = vmul.f32 %v480, %v481
        %v483 = vsub.f32 1.0, %v482
        %v484 = vmul.f32 %v481, %v483
        %v485 = vadd.f32 %v481, %v484
        %vm486 = vweird.f32 %v480
        %vm487 = vweird.f32 %v481
        %vm488 = vmor %vm486, %vm487
        %v489 = vsel %vm488, %v481, %v485
        %v490 = vand.u32 2147483647, %v480
        %vm491 = vcmp.eq.f32.partialorder %v490, 8.507059e+37
        %v492 = vand.u32 %v480, 2147483648
        %v493 = vor.u32 1.1754944e-38, %v492
        %v494 = vsel %vm491, %v493, %v489
        %v495 = vmul.f32 %v470, %v494
        %v496 = vmin.f32 %v495, 1.0
        %v497 = vmax.f32 %v496, -1.0
        %v498 = vadd.f32 %v377, 1.0
        %v499 = vadd.f32 %v417, 1.0
        %v500 = vadd.f32 %v457, 1.0
        %v501 = vadd.f32 %v497, 1.0
        %v502 = vmul.f32 %v330, %v498
        %v503 = vmul.f32 %v331, %v499
        %v504 = vmul.f32 %v332, %v500
        %v505 = vmul.f32 %v333, %v501
        %v506 = vld [vmem:[#allocation2 + $0x60] sm:$0xff]
        %v507 = vld [vmem:[#allocation2 + $0x68] sm:$0xff]
        %v508 = vld [vmem:[#allocation2 + $0xc0] sm:$0xff]
        %v509 = vld [vmem:[#allocation2 + $0xc8] sm:$0xff]
        %vm510 = vcmask 261120
        %v512 = vsel %vm510, %v506, 0
        %v515 = vsel %vm510, %v507, 0
        %517 = vmatpush.msra.mxu0 0.0
        %518 = vmatpush.msra.mxu0 0.0
        %519 = vmatpush.msra.mxu0 0.0
        %520 = vmatpush.msra.mxu0 0.0
        %521 = vmatpush.msra.mxu0 0.0
        %522 = vmatpush.msra.mxu0 0.0
        %523 = vmatpush.msra.mxu0 0.0
        %524 = vmatpush.msra.mxu0 0.0
        %525 = vmatpush.msra.mxu0 0.0
        %526 = vmatpush.msra.mxu0 0.0
        %527 = vmatpush.msra.mxu0 0.0
        %528 = vmatpush.msra.mxu0 0.0
        %529 = vmatpush.msra.mxu0 %v505
        %530 = vmatpush.msra.mxu0 %v504
        %531 = vmatpush.msra.mxu0 %v503
        %532 = vmatpush.msra.mxu0 %v502
        %533 = vmatmul.f32.gmra.mxu0 %v512
        %v534 = vpop.f32.mrf.mxu0
        %v535 = vadd.f32 %v508, %v534
        %536 = vmatmul.f32.gmra.mxu0 %v515
        %v537 = vpop.f32.mrf.mxu0
        %v538 = vadd.f32 %v509, %v537
        %539 = vdwg.mxu0
        %v540 = vadd.f32 %v278, %v535
        %v541 = vadd.f32 %v279, %v538
        %v543 = vsel %vm167, %v540, 0
        %v546 = vsel %vm167, %v541, 0
        %548 = vmatpush.msra.mxu0 0.0
        %549 = vmatpush.msra.mxu0 0.0
        %550 = vmatpush.msra.mxu0 0.0
        %551 = vmatpush.msra.mxu0 0.0
        %552 = vmatpush.msra.mxu0 0.0
        %553 = vmatpush.msra.mxu0 0.0
        %554 = vmatpush.msra.mxu0 0.0
        %555 = vmatpush.msra.mxu0 0.0
        %556 = vmatpush.msra.mxu0 0.0
        %557 = vmatpush.msra.mxu0 0.0
        %558 = vmatpush.msra.mxu0 0.0
        %559 = vmatpush.msra.mxu0 0.0
        %560 = vmatpush.msra.mxu0 0.0
        %561 = vmatpush.msra.mxu0 0.0
        %562 = vmatpush.msra.mxu0 %v176
        %563 = vmatpush.msra.mxu0 0.071428575
        %564 = vmatmul.f32.gmra.mxu0 %v543
        %v565 = vpop.f32.mrf.mxu0
        %v566 = vadd.f32 0.0, %v565
        %567 = vmatmul.f32.gmra.mxu0 %v546
        %v568 = vpop.f32.mrf.mxu0
        %v569 = vadd.f32 0.0, %v568
        %570 = vdwg.mxu0
        %572 = vset.pattern.permute.xlu0 0
        %573 = vperm.xlu0 %572, %v566
        %v574 = vpop.permute.xlu0 %573
        %577 = vset.pattern.permute.xlu0 0
        %578 = vperm.xlu0 %577, %v569
        %v579 = vpop.permute.xlu0 %578
        %v581 = vsub.f32 %v540, %v574
        %v582 = vsub.f32 %v541, %v579
        %v583 = vmul.f32 %v581, %v581
        %v584 = vmul.f32 %v582, %v582
        %v586 = vsel %vm167, %v583, 0
        %v589 = vsel %vm167, %v584, 0
        %591 = vmatpush.msra.mxu0 0.0
        %592 = vmatpush.msra.mxu0 0.0
        %593 = vmatpush.msra.mxu0 0.0
        %594 = vmatpush.msra.mxu0 0.0
        %595 = vmatpush.msra.mxu0 0.0
        %596 = vmatpush.msra.mxu0 0.0
        %597 = vmatpush.msra.mxu0 0.0
        %598 = vmatpush.msra.mxu0 0.0
        %599 = vmatpush.msra.mxu0 0.0
        %600 = vmatpush.msra.mxu0 0.0
        %601 = vmatpush.msra.mxu0 0.0
        %602 = vmatpush.msra.mxu0 0.0
        %603 = vmatpush.msra.mxu0 0.0
        %604 = vmatpush.msra.mxu0 0.0
        %605 = vmatpush.msra.mxu0 %v176
        %606 = vmatpush.msra.mxu0 0.071428575
        %607 = vmatmul.f32.gmra.mxu0 %v586
        %v608 = vpop.f32.mrf.mxu0
        %v609 = vadd.f32 1e-05, %v608
        %610 = vmatmul.f32.gmra.mxu0 %v589
        %v611 = vpop.f32.mrf.mxu0
        %v612 = vadd.f32 1e-05, %v611
        %613 = vdwg.mxu0
        %v614 = vrsqrt.pop %v609
        %v615 = vmul.f32 %v614, %v609
        %v616 = vmul.f32 %v615, %v614
        %v617 = vmul.f32 0.5, %v616
        %v618 = vsub.f32 1.5, %v617
        %v619 = vmul.f32 %v614, %v618
        %vm620 = vweird.f32 %v609
        %vm621 = vweird.f32 %v614
        %vm622 = vmor %vm620, %vm621
        %v623 = vsel %vm622, %v614, %v619
        %v624 = vrsqrt.pop %v612
        %v625 = vmul.f32 %v624, %v612
        %v626 = vmul.f32 %v625, %v624
        %v627 = vmul.f32 0.5, %v626
        %v628 = vsub.f32 1.5, %v627
        %v629 = vmul.f32 %v624, %v628
        %vm630 = vweird.f32 %v612
        %vm631 = vweird.f32 %v624
        %vm632 = vmor %vm630, %vm631
        %v633 = vsel %vm632, %v624, %v629
        %635 = vset.pattern.permute.xlu0 0
        %636 = vperm.xlu0 %635, %v623
        %v637 = vpop.permute.xlu0 %636
        %640 = vset.pattern.permute.xlu0 0
        %641 = vperm.xlu0 %640, %v633
        %v642 = vpop.permute.xlu0 %641
        %v644 = vmul.f32 %v581, %v637
        %v645 = vmul.f32 %v582, %v642
        %v646 = vmul.f32 %v644, %v163
        %v647 = vmul.f32 %v645, %v164
        %v648 = vadd.f32 %v646, %v165
        %v649 = vadd.f32 %v647, %v166
        %v650 = vld [vmem:[#allocation2 + $0x70] sm:$0xff]
        %v651 = vld [vmem:[#allocation2 + $0x78] sm:$0x3f]
        %v652 = vld [vmem:[#allocation2 + $0x20] sm:$0xff]
        %v653 = vld [vmem:[#allocation2 + $0x28] sm:$0xff]
        %v655 = vsel %vm167, %v648, 0
        %v658 = vsel %vm167, %v649, 0
        %v661 = vsel %vm174, %v651, 0
        %663 = vmatpush.msra.mxu0 0.0
        %664 = vmatpush.msra.mxu0 0.0
        %665 = vmatpush.msra.mxu0 0.0
        %666 = vmatpush.msra.mxu0 0.0
        %667 = vmatpush.msra.mxu0 0.0
        %668 = vmatpush.msra.mxu0 0.0
        %669 = vmatpush.msra.mxu0 0.0
        %670 = vmatpush.msra.mxu0 0.0
        %671 = vmatpush.msra.mxu0 0.0
        %672 = vmatpush.msra.mxu0 0.0
        %673 = vmatpush.msra.mxu0 0.0
        %674 = vmatpush.msra.mxu0 0.0
        %675 = vmatpush.msra.mxu0 0.0
        %676 = vmatpush.msra.mxu0 0.0
        %677 = vmatpush.msra.mxu0 %v661
        %678 = vmatpush.msra.mxu0 %v650
        %679 = vmatmul.f32.gmra.mxu0 %v655
        %v680 = vpop.f32.mrf.mxu0
        %v681 = vadd.f32 %v652, %v680
        %682 = vmatmul.f32.gmra.mxu0 %v658
        %v683 = vpop.f32.mrf.mxu0
        %v684 = vadd.f32 %v653, %v683
        %685 = vdwg.mxu0
        %v686 = vmul.f32 %v681, 0.5
        %v687 = vmul.f32 %v684, 0.5
        %v688 = vmul.f32 %v681, 0.70710677
        %v689 = vmul.f32 %v684, 0.70710677
        %v690 = vmul.f32 %v688, %v688
        %v691 = vmin.f32 16.0, %v690
        %v692 = vmul.f32 %v691, 2.1237322e-06
        %v693 = vadd.f32 %v692, 0.00028619796
        %v694 = vmul.f32 %v691, %v693
        %v695 = vadd.f32 %v694, 0.0036580483
        %v696 = vmul.f32 %v691, %v695
        %v697 = vadd.f32 %v696, 0.05243302
        %v698 = vmul.f32 %v691, %v697
        %v699 = vadd.f32 %v698, 0.18741608
        %v700 = vmul.f32 %v691, %v699
        %v701 = vadd.f32 %v700, 1.1283791
        %v702 = vmul.f32 %v688, %v701
        %v703 = vmul.f32 %v691, 3.8918573e-05
        %v704 = vadd.f32 %v703, 0.001143296
        %v705 = vmul.f32 %v691, %v704
        %v706 = vadd.f32 %v705, 0.014752088
        %v707 = vmul.f32 %v691, %v706
        %v708 = vadd.f32 %v707, 0.112945676
        %v709 = vmul.f32 %v691, %v708
        %v710 = vadd.f32 %v709, 0.4994258
        %v711 = vmul.f32 %v691, %v710
        %v712 = vadd.f32 %v711, 1.0
        %v713 = vrcp.pop %v712
        %v714 = vmul.f32 %v712, %v713
        %v715 = vsub.f32 1.0, %v714
        %v716 = vmul.f32 %v713, %v715
        %v717 = vadd.f32 %v713, %v716
        %vm718 = vweird.f32 %v712
        %vm719 = vweird.f32 %v713
        %vm720 = vmor %vm718, %vm719
        %v721 = vsel %vm720, %v713, %v717
        %v722 = vand.u32 2147483647, %v712
        %vm723 = vcmp.eq.f32.partialorder %v722, 8.507059e+37
        %v724 = vand.u32 %v712, 2147483648
        %v725 = vor.u32 1.1754944e-38, %v724
        %v726 = vsel %vm723, %v725, %v721
        %v727 = vmul.f32 %v702, %v726
        %v728 = vmin.f32 %v727, 1.0
        %v729 = vmax.f32 %v728, -1.0
        %v730 = vmul.f32 %v689, %v689
        %v731 = vmin.f32 16.0, %v730
        %v732 = vmul.f32 %v731, 2.1237322e-06
        %v733 = vadd.f32 %v732, 0.00028619796
        %v734 = vmul.f32 %v731, %v733
        %v735 = vadd.f32 %v734, 0.0036580483
        %v736 = vmul.f32 %v731, %v735
        %v737 = vadd.f32 %v736, 0.05243302
        %v738 = vmul.f32 %v731, %v737
        %v739 = vadd.f32 %v738, 0.18741608
        %v740 = vmul.f32 %v731, %v739
        %v741 = vadd.f32 %v740, 1.1283791
        %v742 = vmul.f32 %v689, %v741
        %v743 = vmul.f32 %v731, 3.8918573e-05
        %v744 = vadd.f32 %v743, 0.001143296
        %v745 = vmul.f32 %v731, %v744
        %v746 = vadd.f32 %v745, 0.014752088
        %v747 = vmul.f32 %v731, %v746
        %v748 = vadd.f32 %v747, 0.112945676
        %v749 = vmul.f32 %v731, %v748
        %v750 = vadd.f32 %v749, 0.4994258
        %v751 = vmul.f32 %v731, %v750
        %v752 = vadd.f32 %v751, 1.0
        %v753 = vrcp.pop %v752
        %v754 = vmul.f32 %v752, %v753
        %v755 = vsub.f32 1.0, %v754
        %v756 = vmul.f32 %v753, %v755
        %v757 = vadd.f32 %v753, %v756
        %vm758 = vweird.f32 %v752
        %vm759 = vweird.f32 %v753
        %vm760 = vmor %vm758, %vm759
        %v761 = vsel %vm760, %v753, %v757
        %v762 = vand.u32 2147483647, %v752
        %vm763 = vcmp.eq.f32.partialorder %v762, 8.507059e+37
        %v764 = vand.u32 %v752, 2147483648
        %v765 = vor.u32 1.1754944e-38, %v764
        %v766 = vsel %vm763, %v765, %v761
        %v767 = vmul.f32 %v742, %v766
        %v768 = vmin.f32 %v767, 1.0
        %v769 = vmax.f32 %v768, -1.0
        %v770 = vadd.f32 %v729, 1.0
        %v771 = vadd.f32 %v769, 1.0
        %v772 = vmul.f32 %v686, %v770
        %v773 = vmul.f32 %v687, %v771
        %v774 = vld [vmem:[#allocation2 + $0x80] sm:$0xff]
        %v775 = vld [vmem:[#allocation2 + $0x88] sm:$0xff]
        %v776 = vld [vmem:[#allocation2 + $0x90] sm:$0xff]
        %v777 = vld [vmem:[#allocation2 + $0x98] sm:$0xff]
        %v778 = vld [vmem:[#allocation2 + $0x30] sm:$0xff]
        %v779 = vld [vmem:[#allocation2 + $0x38] sm:$0xff]
        %v781 = vsel %vm510, %v772, 0
        %v784 = vsel %vm510, %v773, 0
        %786 = vmatpush.msra.mxu0 0.0
        %787 = vmatpush.msra.mxu0 0.0
        %788 = vmatpush.msra.mxu0 0.0
        %789 = vmatpush.msra.mxu0 0.0
        %790 = vmatpush.msra.mxu0 0.0
        %791 = vmatpush.msra.mxu0 0.0
        %792 = vmatpush.msra.mxu0 0.0
        %793 = vmatpush.msra.mxu0 0.0
        %794 = vmatpush.msra.mxu0 0.0
        %795 = vmatpush.msra.mxu0 0.0
        %796 = vmatpush.msra.mxu0 0.0
        %797 = vmatpush.msra.mxu0 0.0
        %798 = vmatpush.msra.mxu0 %v777
        %799 = vmatpush.msra.mxu0 %v776
        %800 = vmatpush.msra.mxu0 %v775
        %801 = vmatpush.msra.mxu0 %v774
        %802 = vmatmul.f32.gmra.mxu0 %v781
        %v803 = vpop.f32.mrf.mxu0
        %v804 = vadd.f32 %v778, %v803
        %805 = vmatmul.f32.gmra.mxu0 %v784
        %v806 = vpop.f32.mrf.mxu0
        %v807 = vadd.f32 %v779, %v806
        %808 = vdwg.mxu0
        %v809 = vadd.f32 %v648, %v804
        %v810 = vadd.f32 %v649, %v807
        %811 = vst.msk [vmem:[%s160] sm:$0xff] %vm167, %v809
        %812 = vst.msk [vmem:[%s160 + $0x8] sm:$0xff] %vm167, %v810
        %p813 = scmp.lt.s32.totalorder %s14, 1
        %s814 = scalar_select %p813, %s14, 1
        %s815 = smul.addr %s814, 2
        %s816 = smul.addr %s815, 8
        %s817 = scalar_lea.vmem %s2, %s816
        // Predicated region
        $region33: #{tpu_custom_call.1} parent=27 // pred_check
          %p818 = pneg %p79
        $region34: #{tpu_custom_call.1} parent=27 // pred_check_branch
          %820 = sbr.rel (%p818) target = $region36
        $region35: #{tpu_custom_call.1} parent=27 // pred_region
          _
        $region36: #{tpu_custom_call.1} parent=27 // pred_fallthru
          _
      $region28: #{tpu_custom_call.1} parent=5 // pred_fallthru
        _
      %p821 = scmp.le.s32.totalorder 2, %s9
      // Predicated region
      $region37: #{tpu_custom_call.1} parent=5 // pred_check
        %p822 = pneg %p821
      $region38: #{tpu_custom_call.1} parent=5 // pred_check_branch
        %824 = sbr.rel (%p822) target = $region40
      $region39: #{tpu_custom_call.1} parent=5 // pred_region
        %s825 = ssub.s32 %s9, 2
        // Predicated region
        $region41: #{tpu_custom_call.1} parent=39 // pred_check
          %p826 = pneg %p85
        $region42: #{tpu_custom_call.1} parent=39 // pred_check_branch
          %828 = sbr.rel (%p826) target = $region44
        $region43: #{tpu_custom_call.1} parent=39 // pred_region
          %p829 = scmp.lt.s32.totalorder %s15, 1
          %s830 = scalar_select %p829, %s15, 1
          %s831 = smul.addr %s830, 2
          %s832 = smul.addr %s831, 8
          %s833 = scalar_lea.vmem %s2, %s832
        $region44: #{tpu_custom_call.1} parent=39 // pred_fallthru
          _
      $region40: #{tpu_custom_call.1} parent=5 // pred_fallthru
        _
    $region6: #{tpu_custom_call.1} parent=1 // loop_footer
      %s13 = sadd.s32 1, %s9
    $region7: #{tpu_custom_call.1} parent=1 // loop_footer_branch
      %8 = sbr.rel target = $region3
    $region8: #{tpu_custom_call.1} parent=1 // loop_exit
      _
    %834 = vsyncpa [#allocation3], 1
    %s835 = scalar_lea.sflag [#allocation3], 1
    %836 = vsyncpa %s835, 1

// kernel: tpu_custom_call.1
$region0: #{tpu_custom_call.1}
  #allocation0 [shape = 'u32[]', space=smem, size = 0x4, offset = 0x4, fixed_abs, tag = 'smem constant byte address 0x4 - core index']
  #allocation1 [shape = 'u32[72,128]{1,0:T(1,128)}', space=vmem, size = 0x9000, scoped, tag = 'internal scratch']
  %s0 = inlined_call_operand.vmem [shape: f32[2,16,14], index: 0, kind: input, shape index: {}]
  %s1 = inlined_call_operand.hbm [shape: f32[208,128], index: 1, kind: input, shape index: {}]
  %s2 = inlined_call_operand.vmem [shape: f32[2,16,14], index: 2, kind: output, shape index: {}]
  %s3 = sld [smem:[#allocation0]]
  $region45: #{tpu_custom_call.1} parent=0
    _
  %s5 = ssub.s32 1, %s3
  %s6 = scalar_select 0, %s5, %s3
  $region1: #{tpu_custom_call.1} parent=0
    #allocation2 [shape = 'u8[106496]{0}', space=vmem, size = 0x1a000, scoped, tag = 'input window, operand 1, single buffered']
    #allocation3 [shape = 's32[2]{0}', space=sflag, size = 0x8, scoped, tag = 'scoped memory for tpu_custom_call.1']
    %7 = vsyncpa [#allocation3], 0
    loop: start=0, step=1, limit=4
    $region2: #{tpu_custom_call.1} parent=1 // loop_pre_header
      _
    $region3: #{tpu_custom_call.1} parent=1 // loop_header
      %s9 = sphi 0, %s13
      %p10 = scmp.ge.s32.totalorder %s9, 4
      %s19 = sphi 0, %s21
      %s22 = sphi 0, %s19
      %s23 = sphi 0, %s22
      %s39 = sphi 0, %s23
      %s43 = sphi 0, %s43
      %s45 = sphi 0, %s43
      %s46 = sphi 0, %s45
      %s60 = sphi 0, %s46
      %s66 = sphi 0, %s68
      %s69 = sphi 0, %s66
      %s70 = sphi 0, %s69
      %s86 = sphi 0, %s70
    $region4: #{tpu_custom_call.1} parent=1 // loop_header_branch
      %12 = sbr.rel (%p10) target = $region8
    $region5: #{tpu_custom_call.1} parent=1 // loop_body
      %s14 = ssub.s32 %s9, 1
      %s15 = ssub.s32 %s9, 2
      %s16 = sadd.s32 %s9, 1
      %s17 = ssub.s32 %s9, %s16
      %p18 = scmp.eq.s32.totalorder %s17, 0
      %s20 = sadd.s32 %s19, 1
      %s21 = scalar_select %p18, %s19, %s20
      %p24 = pneg %p18
      %p25 = scmp.eq.s32.totalorder %s9, 1
      %p26 = por %p24, %p25
      %p27 = scmp.ne.s32.totalorder %s19, %s22
      %p28 = scmp.eq.s32.totalorder %s9, 0
      %p29 = por %p27, %p28
      %p30 = scmp.ne.s32.totalorder %s19, %s22
      %p31 = scmp.eq.s32.totalorder %s14, 1
      %p32 = por %p30, %p31
      %p33 = scmp.ne.s32.totalorder %s22, %s23
      %p34 = scmp.eq.s32.totalorder %s14, 0
      %p35 = por %p33, %p34
      %p36 = scmp.ne.s32.totalorder %s22, %s23
      %p37 = scmp.eq.s32.totalorder %s15, 1
      %p38 = por %p36, %p37
      %p40 = scmp.ne.s32.totalorder %s23, %s39
      %p41 = scmp.eq.s32.totalorder %s15, 0
      %p42 = por %p40, %p41
      %s44 = sadd.s32 %s43, 1
      %p47 = scmp.eq.s32.totalorder %s9, 1
      %p48 = scmp.ne.s32.totalorder %s43, %s45
      %p49 = scmp.eq.s32.totalorder %s9, 0
      %p50 = por %p48, %p49
      %p51 = scmp.ne.s32.totalorder %s43, %s45
      %p52 = scmp.eq.s32.totalorder %s14, 1
      %p53 = por %p51, %p52
      %p54 = scmp.ne.s32.totalorder %s45, %s46
      %p55 = scmp.eq.s32.totalorder %s14, 0
      %p56 = por %p54, %p55
      %p57 = scmp.ne.s32.totalorder %s45, %s46
      %p58 = scmp.eq.s32.totalorder %s15, 1
      %p59 = por %p57, %p58
      %p61 = scmp.ne.s32.totalorder %s46, %s60
      %p62 = scmp.eq.s32.totalorder %s15, 0
      %p63 = por %p61, %p62
      %s64 = ssub.s32 %s9, %s16
      %p65 = scmp.eq.s32.totalorder %s64, 0
      %s67 = sadd.s32 %s66, 1
      %s68 = scalar_select %p65, %s66, %s67
      %p71 = pneg %p65
      %p72 = scmp.eq.s32.totalorder %s9, 1
      %p73 = por %p71, %p72
      %p74 = scmp.ne.s32.totalorder %s66, %s69
      %p75 = scmp.eq.s32.totalorder %s9, 0
      %p76 = por %p74, %p75
      %p77 = scmp.ne.s32.totalorder %s66, %s69
      %p78 = scmp.eq.s32.totalorder %s14, 1
      %p79 = por %p77, %p78
      %p80 = scmp.ne.s32.totalorder %s69, %s70
      %p81 = scmp.eq.s32.totalorder %s14, 0
      %p82 = por %p80, %p81
      %p83 = scmp.ne.s32.totalorder %s69, %s70
      %p84 = scmp.eq.s32.totalorder %s15, 1
      %p85 = por %p83, %p84
      %p87 = scmp.ne.s32.totalorder %s70, %s86
      %p88 = scmp.eq.s32.totalorder %s15, 0
      %p89 = por %p87, %p88
      %p90 = scmp.le.s32.totalorder 1, %s9
      %p91 = scmp.lt.s32.totalorder %s9, 3
      %p92 = pnand %p90, %p91
      %p93 = pneg %p92
      // Predicated region
      $region9: #{tpu_custom_call.1} parent=5 // pred_check
        _
      $region10: #{tpu_custom_call.1} parent=5 // pred_check_branch
        %95 = sbr.rel (%p92) target = $region12
      $region11: #{tpu_custom_call.1} parent=5 // pred_region
        %s96 = ssub.s32 %s9, 1
        // Predicated region
        $region13: #{tpu_custom_call.1} parent=11 // pred_check
          %p97 = pneg %p56
        $region14: #{tpu_custom_call.1} parent=11 // pred_check_branch
          %99 = sbr.rel (%p97) target = $region16
        $region15: #{tpu_custom_call.1} parent=11 // pred_region
          %101 = vsyncadd [#allocation3], 0
          %s102 = sshll.u32 %s1, 4
          %s103 = int_to_ptr.hbm [resolvable:$true] %s102
          %s104 = sshll.u32 [#allocation2], 4
          %s105 = int_to_ptr.vmem [resolvable:$true] %s104
          %110 = dma.hbm_to_vmem [thread:$0]  %s103, 3328, %s105, [#allocation3], 128, 128, 8
        $region16: #{tpu_custom_call.1} parent=11 // pred_fallthru
          _
      $region12: #{tpu_custom_call.1} parent=5 // pred_fallthru
        _
      %p111 = scmp.lt.s32.totalorder %s9, 2
      // Predicated region
      $region17: #{tpu_custom_call.1} parent=5 // pred_check
        %p112 = pneg %p111
      $region18: #{tpu_custom_call.1} parent=5 // pred_check_branch
        %114 = sbr.rel (%p112) target = $region20
      $region19: #{tpu_custom_call.1} parent=5 // pred_region
        // Predicated region
        $region21: #{tpu_custom_call.1} parent=19 // pred_check
          %p115 = pneg %p29
        $region22: #{tpu_custom_call.1} parent=19 // pred_check_branch
          %117 = sbr.rel (%p115) target = $region24
        $region23: #{tpu_custom_call.1} parent=19 // pred_region
          %p118 = scmp.lt.s32.totalorder %s9, 1
          %s119 = scalar_select %p118, %s9, 1
          %s120 = smul.addr %s119, 2
          %s121 = smul.addr %s120, 8
          %s122 = scalar_lea.vmem %s0, %s121
        $region24: #{tpu_custom_call.1} parent=19 // pred_fallthru
          _
      $region20: #{tpu_custom_call.1} parent=5 // pred_fallthru
        _
      %p123 = scmp.le.s32.totalorder 1, %s9
      %p124 = scmp.lt.s32.totalorder %s9, 3
      %p125 = pnand %p123, %p124
      %p126 = pneg %p125
      // Predicated region
      $region25: #{tpu_custom_call.1} parent=5 // pred_check
        _
      $region26: #{tpu_custom_call.1} parent=5 // pred_check_branch
        %128 = sbr.rel (%p125) target = $region28
      $region27: #{tpu_custom_call.1} parent=5 // pred_region
        %s129 = ssub.s32 %s9, 1
        // Predicated region
        $region29: #{tpu_custom_call.1} parent=27 // pred_check
          %p130 = pneg %p56
        $region30: #{tpu_custom_call.1} parent=27 // pred_check_branch
          %132 = sbr.rel (%p130) target = $region32
        $region31: #{tpu_custom_call.1} parent=27 // pred_region
          %134 = dma.done [#allocation3], 3328
        $region32: #{tpu_custom_call.1} parent=27 // pred_fallthru
          _
        %p135 = scmp.lt.s32.totalorder %s14, 1
        %s136 = scalar_select %p135, %s14, 1
        %s137 = smul.addr %s136, 2
        %s138 = smul.addr %s137, 8
        %s139 = scalar_lea.vmem %s0, %s138
        %p140 = pneg %p35
        %p141 = pneg %p32
        %p142 = pneg %p56
        %p143 = pneg %p53
        %p144 = pneg %p82
        %p145 = pneg %p79
        %p146 = scmp.lt.s32.totalorder %s14, 1
        %s147 = scalar_select %p146, %s14, 1
        %s148 = smul.addr %s147, 2
        %s149 = smul.addr %s148, 8
        %s150 = scalar_lea.vmem %s2, %s149
        %p151 = scmp.lt.s32.totalorder %s14, 1
        %s152 = scalar_select %p151, %s14, 1
        %s153 = smul.addr %s152, 2
        %s154 = smul.addr %s153, 8
        %s155 = scalar_lea.vmem %s0, %s154
        %p156 = scmp.lt.s32.totalorder %s14, 1
        %s157 = scalar_select %p156, %s14, 1
        %s158 = smul.addr %s157, 2
        %s159 = smul.addr %s158, 8
        %s160 = scalar_lea.vmem %s2, %s159
        %v161 = vld [vmem:[%s155] sm:$0xff]
        %v162 = vld [vmem:[%s155 + $0x8] sm:$0xff]
        %v163 = vld [vmem:[#allocation2] sm:$0xff]
        %v164 = vld [vmem:[#allocation2 + $0x8] sm:$0xff]
        %v165 = vld [vmem:[#allocation2 + $0x10] sm:$0xff]
        %v166 = vld [vmem:[#allocation2 + $0x18] sm:$0xff]
        %vm167 = vcmask 113664
        %v169 = vsel %vm167, %v161, 0
        %v172 = vsel %vm167, %v162, 0
        %vm174 = vcmask 1045504
        %v176 = vsel %vm174, 0.071428575, 0
        %178 = vmatpush.msra.mxu0 0.0
        %179 = vmatpush.msra.mxu0 0.0
        %180 = vmatpush.msra.mxu0 0.0
        %181 = vmatpush.msra.mxu0 0.0
        %182 = vmatpush.msra.mxu0 0.0
        %183 = vmatpush.msra.mxu0 0.0
        %184 = vmatpush.msra.mxu0 0.0
        %185 = vmatpush.msra.mxu0 0.0
        %186 = vmatpush.msra.mxu0 0.0
        %187 = vmatpush.msra.mxu0 0.0
        %188 = vmatpush.msra.mxu0 0.0
        %189 = vmatpush.msra.mxu0 0.0
        %190 = vmatpush.msra.mxu0 0.0
        %191 = vmatpush.msra.mxu0 0.0
        %192 = vmatpush.msra.mxu0 %v176
        %193 = vmatpush.msra.mxu0 0.071428575
        %194 = vmatmul.f32.gmra.mxu0 %v169
        %v195 = vpop.f32.mrf.mxu0
        %v196 = vadd.f32 0.0, %v195
        %197 = vmatmul.f32.gmra.mxu0 %v172
        %v198 = vpop.f32.mrf.mxu0
        %v199 = vadd.f32 0.0, %v198
        %200 = vdwg.mxu0
        %202 = vset.pattern.permute.xlu0 0
        %203 = vperm.xlu0 %202, %v196
        %v204 = vpop.permute.xlu0 %203
        %207 = vset.pattern.permute.xlu0 0
        %208 = vperm.xlu0 %207, %v199
        %v209 = vpop.permute.xlu0 %208
        %v211 = vsub.f32 %v161, %v204
        %v212 = vsub.f32 %v162, %v209
        %v213 = vmul.f32 %v211, %v211
        %v214 = vmul.f32 %v212, %v212
        %v216 = vsel %vm167, %v213, 0
        %v219 = vsel %vm167, %v214, 0
        %221 = vmatpush.msra.mxu0 0.0
        %222 = vmatpush.msra.mxu0 0.0
        %223 = vmatpush.msra.mxu0 0.0
        %224 = vmatpush.msra.mxu0 0.0
        %225 = vmatpush.msra.mxu0 0.0
        %226 = vmatpush.msra.mxu0 0.0
        %227 = vmatpush.msra.mxu0 0.0
        %228 = vmatpush.msra.mxu0 0.0
        %229 = vmatpush.msra.mxu0 0.0
        %230 = vmatpush.msra.mxu0 0.0
        %231 = vmatpush.msra.mxu0 0.0
        %232 = vmatpush.msra.mxu0 0.0
        %233 = vmatpush.msra.mxu0 0.0
        %234 = vmatpush.msra.mxu0 0.0
        %235 = vmatpush.msra.mxu0 %v176
        %236 = vmatpush.msra.mxu0 0.071428575
        %237 = vmatmul.f32.gmra.mxu0 %v216
        %v238 = vpop.f32.mrf.mxu0
        %v239 = vadd.f32 1e-05, %v238
        %240 = vmatmul.f32.gmra.mxu0 %v219
        %v241 = vpop.f32.mrf.mxu0
        %v242 = vadd.f32 1e-05, %v241
        %243 = vdwg.mxu0
        %v244 = vrsqrt.pop %v239
        %v245 = vmul.f32 %v244, %v239
        %v246 = vmul.f32 %v245, %v244
        %v247 = vmul.f32 0.5, %v246
        %v248 = vsub.f32 1.5, %v247
        %v249 = vmul.f32 %v244, %v248
        %vm250 = vweird.f32 %v239
        %vm251 = vweird.f32 %v244
        %vm252 = vmor %vm250, %vm251
        %v253 = vsel %vm252, %v244, %v249
        %v254 = vrsqrt.pop %v242
        %v255 = vmul.f32 %v254, %v242
        %v256 = vmul.f32 %v255, %v254
        %v257 = vmul.f32 0.5, %v256
        %v258 = vsub.f32 1.5, %v257
        %v259 = vmul.f32 %v254, %v258
        %vm260 = vweird.f32 %v242
        %vm261 = vweird.f32 %v254
        %vm262 = vmor %vm260, %vm261
        %v263 = vsel %vm262, %v254, %v259
        %265 = vset.pattern.permute.xlu0 0
        %266 = vperm.xlu0 %265, %v253
        %v267 = vpop.permute.xlu0 %266
        %270 = vset.pattern.permute.xlu0 0
        %271 = vperm.xlu0 %270, %v263
        %v272 = vpop.permute.xlu0 %271
        %v274 = vmul.f32 %v211, %v267
        %v275 = vmul.f32 %v212, %v272
        %v276 = vmul.f32 %v274, %v163
        %v277 = vmul.f32 %v275, %v164
        %v278 = vadd.f32 %v276, %v165
        %v279 = vadd.f32 %v277, %v166
        %v280 = vld [vmem:[#allocation2 + $0x40] sm:$0xff]
        %v281 = vld [vmem:[#allocation2 + $0x48] sm:$0xff]
        %v282 = vld [vmem:[#allocation2 + $0x50] sm:$0xff]
        %v283 = vld [vmem:[#allocation2 + $0x58] sm:$0xff]
        %v284 = vld [vmem:[#allocation2 + $0xa0] sm:$0xff]
        %v285 = vld [vmem:[#allocation2 + $0xa8] sm:$0xff]
        %v286 = vld [vmem:[#allocation2 + $0xb0] sm:$0xff]
        %v287 = vld [vmem:[#allocation2 + $0xb8] sm:$0xff]
        %vm288 = vcmask 130048
        %v290 = vsel %vm288, %v280, 0
        %v293 = vsel %vm288, %v281, 0
        %v296 = vsel %vm288, %v282, 0
        %v299 = vsel %vm288, %v283, 0
        %301 = vmatpush.msra.mxu0 0.0
        %302 = vmatpush.msra.mxu0 0.0
        %303 = vmatpush.msra.mxu0 0.0
        %304 = vmatpush.msra.mxu0 0.0
        %305 = vmatpush.msra.mxu0 0.0
        %306 = vmatpush.msra.mxu0 0.0
        %307 = vmatpush.msra.mxu0 0.0
        %308 = vmatpush.msra.mxu0 0.0
        %309 = vmatpush.msra.mxu0 0.0
        %310 = vmatpush.msra.mxu0 0.0
        %311 = vmatpush.msra.mxu0 0.0
        %312 = vmatpush.msra.mxu0 0.0
        %313 = vmatpush.msra.mxu0 0.0
        %314 = vmatpush.msra.mxu0 0.0
        %315 = vmatpush.msra.mxu0 %v279
        %316 = vmatpush.msra.mxu0 %v278
        %317 = vmatmul.f32.gmra.mxu0 %v290
        %v318 = vpop.f32.mrf.mxu0
        %v319 = vadd.f32 %v284, %v318
        %320 = vmatmul.f32.gmra.mxu0 %v293
        %v321 = vpop.f32.mrf.mxu0
        %v322 = vadd.f32 %v285, %v321
        %323 = vmatmul.f32.gmra.mxu0 %v296
        %v324 = vpop.f32.mrf.mxu0
        %v325 = vadd.f32 %v286, %v324
        %326 = vmatmul.f32.gmra.mxu0 %v299
        %v327 = vpop.f32.mrf.mxu0
        %v328 = vadd.f32 %v287, %v327
        %329 = vdwg.mxu0
        %v330 = vmul.f32 %v319, 0.5
        %v331 = vmul.f32 %v322, 0.5
        %v332 = vmul.f32 %v325, 0.5
        %v333 = vmul.f32 %v328, 0.5
        %v334 = vmul.f32 %v319, 0.70710677
        %v335 = vmul.f32 %v322, 0.70710677
        %v336 = vmul.f32 %v325, 0.70710677
        %v337 = vmul.f32 %v328, 0.70710677
        %v338 = vmul.f32 %v334, %v334
        %v339 = vmin.f32 16.0, %v338
        %v340 = vmul.f32 %v339, 2.1237322e-06
        %v341 = vadd.f32 %v340, 0.00028619796
        %v342 = vmul.f32 %v339, %v341
        %v343 = vadd.f32 %v342, 0.0036580483
        %v344 = vmul.f32 %v339, %v343
        %v345 = vadd.f32 %v344, 0.05243302
        %v346 = vmul.f32 %v339, %v345
        %v347 = vadd.f32 %v346, 0.18741608
        %v348 = vmul.f32 %v339, %v347
        %v349 = vadd.f32 %v348, 1.1283791
        %v350 = vmul.f32 %v334, %v349
        %v351 = vmul.f32 %v339, 3.8918573e-05
        %v352 = vadd.f32 %v351, 0.001143296
        %v353 = vmul.f32 %v339, %v352
        %v354 = vadd.f32 %v353, 0.014752088
        %v355 = vmul.f32 %v339, %v354
        %v356 = vadd.f32 %v355, 0.112945676
        %v357 = vmul.f32 %v339, %v356
        %v358 = vadd.f32 %v357, 0.4994258
        %v359 = vmul.f32 %v339, %v358
        %v360 = vadd.f32 %v359, 1.0
        %v361 = vrcp.pop %v360
        %v362 = vmul.f32 %v360, %v361
        %v363 = vsub.f32 1.0, %v362
        %v364 = vmul.f32 %v361, %v363
        %v365 = vadd.f32 %v361, %v364
        %vm366 = vweird.f32 %v360
        %vm367 = vweird.f32 %v361
        %vm368 = vmor %vm366, %vm367
        %v369 = vsel %vm368, %v361, %v365
        %v370 = vand.u32 2147483647, %v360
        %vm371 = vcmp.eq.f32.partialorder %v370, 8.507059e+37
        %v372 = vand.u32 %v360, 2147483648
        %v373 = vor.u32 1.1754944e-38, %v372
        %v374 = vsel %vm371, %v373, %v369
        %v375 = vmul.f32 %v350, %v374
        %v376 = vmin.f32 %v375, 1.0
        %v377 = vmax.f32 %v376, -1.0
        %v378 = vmul.f32 %v335, %v335
        %v379 = vmin.f32 16.0, %v378
        %v380 = vmul.f32 %v379, 2.1237322e-06
        %v381 = vadd.f32 %v380, 0.00028619796
        %v382 = vmul.f32 %v379, %v381
        %v383 = vadd.f32 %v382, 0.0036580483
        %v384 = vmul.f32 %v379, %v383
        %v385 = vadd.f32 %v384, 0.05243302
        %v386 = vmul.f32 %v379, %v385
        %v387 = vadd.f32 %v386, 0.18741608
        %v388 = vmul.f32 %v379, %v387
        %v389 = vadd.f32 %v388, 1.1283791
        %v390 = vmul.f32 %v335, %v389
        %v391 = vmul.f32 %v379, 3.8918573e-05
        %v392 = vadd.f32 %v391, 0.001143296
        %v393 = vmul.f32 %v379, %v392
        %v394 = vadd.f32 %v393, 0.014752088
        %v395 = vmul.f32 %v379, %v394
        %v396 = vadd.f32 %v395, 0.112945676
        %v397 = vmul.f32 %v379, %v396
        %v398 = vadd.f32 %v397, 0.4994258
        %v399 = vmul.f32 %v379, %v398
        %v400 = vadd.f32 %v399, 1.0
        %v401 = vrcp.pop %v400
        %v402 = vmul.f32 %v400, %v401
        %v403 = vsub.f32 1.0, %v402
        %v404 = vmul.f32 %v401, %v403
        %v405 = vadd.f32 %v401, %v404
        %vm406 = vweird.f32 %v400
        %vm407 = vweird.f32 %v401
        %vm408 = vmor %vm406, %vm407
        %v409 = vsel %vm408, %v401, %v405
        %v410 = vand.u32 2147483647, %v400
        %vm411 = vcmp.eq.f32.partialorder %v410, 8.507059e+37
        %v412 = vand.u32 %v400, 2147483648
        %v413 = vor.u32 1.1754944e-38, %v412
        %v414 = vsel %vm411, %v413, %v409
        %v415 = vmul.f32 %v390, %v414
        %v416 = vmin.f32 %v415, 1.0
        %v417 = vmax.f32 %v416, -1.0
        %v418 = vmul.f32 %v336, %v336
        %v419 = vmin.f32 16.0, %v418
        %v420 = vmul.f32 %v419, 2.1237322e-06
        %v421 = vadd.f32 %v420, 0.00028619796
        %v422 = vmul.f32 %v419, %v421
        %v423 = vadd.f32 %v422, 0.0036580483
        %v424 = vmul.f32 %v419, %v423
        %v425 = vadd.f32 %v424, 0.05243302
        %v426 = vmul.f32 %v419, %v425
        %v427 = vadd.f32 %v426, 0.18741608
        %v428 = vmul.f32 %v419, %v427
        %v429 = vadd.f32 %v428, 1.1283791
        %v430 = vmul.f32 %v336, %v429
        %v431 = vmul.f32 %v419, 3.8918573e-05
        %v432 = vadd.f32 %v431, 0.001143296
        %v433 = vmul.f32 %v419, %v432
        %v434 = vadd.f32 %v433, 0.014752088
        %v435 = vmul.f32 %v419, %v434
        %v436 = vadd.f32 %v435, 0.112945676
        %v437 = vmul.f32 %v419, %v436
        %v438 = vadd.f32 %v437, 0.4994258
        %v439 = vmul.f32 %v419, %v438
        %v440 = vadd.f32 %v439, 1.0
        %v441 = vrcp.pop %v440
        %v442 = vmul.f32 %v440, %v441
        %v443 = vsub.f32 1.0, %v442
        %v444 = vmul.f32 %v441, %v443
        %v445 = vadd.f32 %v441, %v444
        %vm446 = vweird.f32 %v440
        %vm447 = vweird.f32 %v441
        %vm448 = vmor %vm446, %vm447
        %v449 = vsel %vm448, %v441, %v445
        %v450 = vand.u32 2147483647, %v440
        %vm451 = vcmp.eq.f32.partialorder %v450, 8.507059e+37
        %v452 = vand.u32 %v440, 2147483648
        %v453 = vor.u32 1.1754944e-38, %v452
        %v454 = vsel %vm451, %v453, %v449
        %v455 = vmul.f32 %v430, %v454
        %v456 = vmin.f32 %v455, 1.0
        %v457 = vmax.f32 %v456, -1.0
        %v458 = vmul.f32 %v337, %v337
        %v459 = vmin.f32 16.0, %v458
        %v460 = vmul.f32 %v459, 2.1237322e-06
        %v461 = vadd.f32 %v460, 0.00028619796
        %v462 = vmul.f32 %v459, %v461
        %v463 = vadd.f32 %v462, 0.0036580483
        %v464 = vmul.f32 %v459, %v463
        %v465 = vadd.f32 %v464, 0.05243302
        %v466 = vmul.f32 %v459, %v465
        %v467 = vadd.f32 %v466, 0.18741608
        %v468 = vmul.f32 %v459, %v467
        %v469 = vadd.f32 %v468, 1.1283791
        %v470 = vmul.f32 %v337, %v469
        %v471 = vmul.f32 %v459, 3.8918573e-05
        %v472 = vadd.f32 %v471, 0.001143296
        %v473 = vmul.f32 %v459, %v472
        %v474 = vadd.f32 %v473, 0.014752088
        %v475 = vmul.f32 %v459, %v474
        %v476 = vadd.f32 %v475, 0.112945676
        %v477 = vmul.f32 %v459, %v476
        %v478 = vadd.f32 %v477, 0.4994258
        %v479 = vmul.f32 %v459, %v478
        %v480 = vadd.f32 %v479, 1.0
        %v481 = vrcp.pop %v480
        %v482 = vmul.f32 %v480, %v481
        %v483 = vsub.f32 1.0, %v482
        %v484 = vmul.f32 %v481, %v483
        %v485 = vadd.f32 %v481, %v484
        %vm486 = vweird.f32 %v480
        %vm487 = vweird.f32 %v481
        %vm488 = vmor %vm486, %vm487
        %v489 = vsel %vm488, %v481, %v485
        %v490 = vand.u32 2147483647, %v480
        %vm491 = vcmp.eq.f32.partialorder %v490, 8.507059e+37
        %v492 = vand.u32 %v480, 2147483648
        %v493 = vor.u32 1.1754944e-38, %v492
        %v494 = vsel %vm491, %v493, %v489
        %v495 = vmul.f32 %v470, %v494
        %v496 = vmin.f32 %v495, 1.0
        %v497 = vmax.f32 %v496, -1.0
        %v498 = vadd.f32 %v377, 1.0
        %v499 = vadd.f32 %v417, 1.0
        %v500 = vadd.f32 %v457, 1.0
        %v501 = vadd.f32 %v497, 1.0
        %v502 = vmul.f32 %v330, %v498
        %v503 = vmul.f32 %v331, %v499
        %v504 = vmul.f32 %v332, %v500
        %v505 = vmul.f32 %v333, %v501
        %v506 = vld [vmem:[#allocation2 + $0x60] sm:$0xff]
        %v507 = vld [vmem:[#allocation2 + $0x68] sm:$0xff]
        %v508 = vld [vmem:[#allocation2 + $0xc0] sm:$0xff]
        %v509 = vld [vmem:[#allocation2 + $0xc8] sm:$0xff]
        %vm510 = vcmask 261120
        %v512 = vsel %vm510, %v506, 0
        %v515 = vsel %vm510, %v507, 0
        %517 = vmatpush.msra.mxu0 0.0
        %518 = vmatpush.msra.mxu0 0.0
        %519 = vmatpush.msra.mxu0 0.0
        %520 = vmatpush.msra.mxu0 0.0
        %521 = vmatpush.msra.mxu0 0.0
        %522 = vmatpush.msra.mxu0 0.0
        %523 = vmatpush.msra.mxu0 0.0
        %524 = vmatpush.msra.mxu0 0.0
        %525 = vmatpush.msra.mxu0 0.0
        %526 = vmatpush.msra.mxu0 0.0
        %527 = vmatpush.msra.mxu0 0.0
        %528 = vmatpush.msra.mxu0 0.0
        %529 = vmatpush.msra.mxu0 %v505
        %530 = vmatpush.msra.mxu0 %v504
        %531 = vmatpush.msra.mxu0 %v503
        %532 = vmatpush.msra.mxu0 %v502
        %533 = vmatmul.f32.gmra.mxu0 %v512
        %v534 = vpop.f32.mrf.mxu0
        %v535 = vadd.f32 %v508, %v534
        %536 = vmatmul.f32.gmra.mxu0 %v515
        %v537 = vpop.f32.mrf.mxu0
        %v538 = vadd.f32 %v509, %v537
        %539 = vdwg.mxu0
        %v540 = vadd.f32 %v278, %v535
        %v541 = vadd.f32 %v279, %v538
        %v543 = vsel %vm167, %v540, 0
        %v546 = vsel %vm167, %v541, 0
        %548 = vmatpush.msra.mxu0 0.0
        %549 = vmatpush.msra.mxu0 0.0
        %550 = vmatpush.msra.mxu0 0.0
        %551 = vmatpush.msra.mxu0 0.0
        %552 = vmatpush.msra.mxu0 0.0
        %553 = vmatpush.msra.mxu0 0.0
        %554 = vmatpush.msra.mxu0 0.0
        %555 = vmatpush.msra.mxu0 0.0
        %556 = vmatpush.msra.mxu0 0.0
        %557 = vmatpush.msra.mxu0 0.0
        %558 = vmatpush.msra.mxu0 0.0
        %559 = vmatpush.msra.mxu0 0.0
        %560 = vmatpush.msra.mxu0 0.0
        %561 = vmatpush.msra.mxu0 0.0
        %562 = vmatpush.msra.mxu0 %v176
        %563 = vmatpush.msra.mxu0 0.071428575
        %564 = vmatmul.f32.gmra.mxu0 %v543
        %v565 = vpop.f32.mrf.mxu0
        %v566 = vadd.f32 0.0, %v565
        %567 = vmatmul.f32.gmra.mxu0 %v546
        %v568 = vpop.f32.mrf.mxu0
        %v569 = vadd.f32 0.0, %v568
        %570 = vdwg.mxu0
        %572 = vset.pattern.permute.xlu0 0
        %573 = vperm.xlu0 %572, %v566
        %v574 = vpop.permute.xlu0 %573
        %577 = vset.pattern.permute.xlu0 0
        %578 = vperm.xlu0 %577, %v569
        %v579 = vpop.permute.xlu0 %578
        %v581 = vsub.f32 %v540, %v574
        %v582 = vsub.f32 %v541, %v579
        %v583 = vmul.f32 %v581, %v581
        %v584 = vmul.f32 %v582, %v582
        %v586 = vsel %vm167, %v583, 0
        %v589 = vsel %vm167, %v584, 0
        %591 = vmatpush.msra.mxu0 0.0
        %592 = vmatpush.msra.mxu0 0.0
        %593 = vmatpush.msra.mxu0 0.0
        %594 = vmatpush.msra.mxu0 0.0
        %595 = vmatpush.msra.mxu0 0.0
        %596 = vmatpush.msra.mxu0 0.0
        %597 = vmatpush.msra.mxu0 0.0
        %598 = vmatpush.msra.mxu0 0.0
        %599 = vmatpush.msra.mxu0 0.0
        %600 = vmatpush.msra.mxu0 0.0
        %601 = vmatpush.msra.mxu0 0.0
        %602 = vmatpush.msra.mxu0 0.0
        %603 = vmatpush.msra.mxu0 0.0
        %604 = vmatpush.msra.mxu0 0.0
        %605 = vmatpush.msra.mxu0 %v176
        %606 = vmatpush.msra.mxu0 0.071428575
        %607 = vmatmul.f32.gmra.mxu0 %v586
        %v608 = vpop.f32.mrf.mxu0
        %v609 = vadd.f32 1e-05, %v608
        %610 = vmatmul.f32.gmra.mxu0 %v589
        %v611 = vpop.f32.mrf.mxu0
        %v612 = vadd.f32 1e-05, %v611
        %613 = vdwg.mxu0
        %v614 = vrsqrt.pop %v609
        %v615 = vmul.f32 %v614, %v609
        %v616 = vmul.f32 %v615, %v614
        %v617 = vmul.f32 0.5, %v616
        %v618 = vsub.f32 1.5, %v617
        %v619 = vmul.f32 %v614, %v618
        %vm620 = vweird.f32 %v609
        %vm621 = vweird.f32 %v614
        %vm622 = vmor %vm620, %vm621
        %v623 = vsel %vm622, %v614, %v619
        %v624 = vrsqrt.pop %v612
        %v625 = vmul.f32 %v624, %v612
        %v626 = vmul.f32 %v625, %v624
        %v627 = vmul.f32 0.5, %v626
        %v628 = vsub.f32 1.5, %v627
        %v629 = vmul.f32 %v624, %v628
        %vm630 = vweird.f32 %v612
        %vm631 = vweird.f32 %v624
        %vm632 = vmor %vm630, %vm631
        %v633 = vsel %vm632, %v624, %v629
        %635 = vset.pattern.permute.xlu0 0
        %636 = vperm.xlu0 %635, %v623
        %v637 = vpop.permute.xlu0 %636
        %640 = vset.pattern.permute.xlu0 0
        %641 = vperm.xlu0 %640, %v633
        %v642 = vpop.permute.xlu0 %641
        %v644 = vmul.f32 %v581, %v637
        %v645 = vmul.f32 %v582, %v642
        %v646 = vmul.f32 %v644, %v163
        %v647 = vmul.f32 %v645, %v164
        %v648 = vadd.f32 %v646, %v165
        %v649 = vadd.f32 %v647, %v166
        %v650 = vld [vmem:[#allocation2 + $0x70] sm:$0xff]
        %v651 = vld [vmem:[#allocation2 + $0x78] sm:$0x3f]
        %v652 = vld [vmem:[#allocation2 + $0x20] sm:$0xff]
        %v653 = vld [vmem:[#allocation2 + $0x28] sm:$0xff]
        %v655 = vsel %vm167, %v648, 0
        %v658 = vsel %vm167, %v649, 0
        %v661 = vsel %vm174, %v651, 0
        %663 = vmatpush.msra.mxu0 0.0
        %664 = vmatpush.msra.mxu0 0.0
        %665 = vmatpush.msra.mxu0 0.0
        %666 = vmatpush.msra.mxu0 0.0
        %667 = vmatpush.msra.mxu0 0.0
        %668 = vmatpush.msra.mxu0 0.0
        %669 = vmatpush.msra.mxu0 0.0
        %670 = vmatpush.msra.mxu0 0.0
        %671 = vmatpush.msra.mxu0 0.0
        %672 = vmatpush.msra.mxu0 0.0
        %673 = vmatpush.msra.mxu0 0.0
        %674 = vmatpush.msra.mxu0 0.0
        %675 = vmatpush.msra.mxu0 0.0
        %676 = vmatpush.msra.mxu0 0.0
        %677 = vmatpush.msra.mxu0 %v661
        %678 = vmatpush.msra.mxu0 %v650
        %679 = vmatmul.f32.gmra.mxu0 %v655
        %v680 = vpop.f32.mrf.mxu0
        %v681 = vadd.f32 %v652, %v680
        %682 = vmatmul.f32.gmra.mxu0 %v658
        %v683 = vpop.f32.mrf.mxu0
        %v684 = vadd.f32 %v653, %v683
        %685 = vdwg.mxu0
        %v686 = vmul.f32 %v681, 0.5
        %v687 = vmul.f32 %v684, 0.5
        %v688 = vmul.f32 %v681, 0.70710677
        %v689 = vmul.f32 %v684, 0.70710677
        %v690 = vmul.f32 %v688, %v688
        %v691 = vmin.f32 16.0, %v690
        %v692 = vmul.f32 %v691, 2.1237322e-06
        %v693 = vadd.f32 %v692, 0.00028619796
        %v694 = vmul.f32 %v691, %v693
        %v695 = vadd.f32 %v694, 0.0036580483
        %v696 = vmul.f32 %v691, %v695
        %v697 = vadd.f32 %v696, 0.05243302
        %v698 = vmul.f32 %v691, %v697
        %v699 = vadd.f32 %v698, 0.18741608
        %v700 = vmul.f32 %v691, %v699
        %v701 = vadd.f32 %v700, 1.1283791
        %v702 = vmul.f32 %v688, %v701
        %v703 = vmul.f32 %v691, 3.8918573e-05
        %v704 = vadd.f32 %v703, 0.001143296
        %v705 = vmul.f32 %v691, %v704
        %v706 = vadd.f32 %v705, 0.014752088
        %v707 = vmul.f32 %v691, %v706
        %v708 = vadd.f32 %v707, 0.112945676
        %v709 = vmul.f32 %v691, %v708
        %v710 = vadd.f32 %v709, 0.4994258
        %v711 = vmul.f32 %v691, %v710
        %v712 = vadd.f32 %v711, 1.0
        %v713 = vrcp.pop %v712
        %v714 = vmul.f32 %v712, %v713
        %v715 = vsub.f32 1.0, %v714
        %v716 = vmul.f32 %v713, %v715
        %v717 = vadd.f32 %v713, %v716
        %vm718 = vweird.f32 %v712
        %vm719 = vweird.f32 %v713
        %vm720 = vmor %vm718, %vm719
        %v721 = vsel %vm720, %v713, %v717
        %v722 = vand.u32 2147483647, %v712
        %vm723 = vcmp.eq.f32.partialorder %v722, 8.507059e+37
        %v724 = vand.u32 %v712, 2147483648
        %v725 = vor.u32 1.1754944e-38, %v724
        %v726 = vsel %vm723, %v725, %v721
        %v727 = vmul.f32 %v702, %v726
        %v728 = vmin.f32 %v727, 1.0
        %v729 = vmax.f32 %v728, -1.0
        %v730 = vmul.f32 %v689, %v689
        %v731 = vmin.f32 16.0, %v730
        %v732 = vmul.f32 %v731, 2.1237322e-06
        %v733 = vadd.f32 %v732, 0.00028619796
        %v734 = vmul.f32 %v731, %v733
        %v735 = vadd.f32 %v734, 0.0036580483
        %v736 = vmul.f32 %v731, %v735
        %v737 = vadd.f32 %v736, 0.05243302
        %v738 = vmul.f32 %v731, %v737
        %v739 = vadd.f32 %v738, 0.18741608
        %v740 = vmul.f32 %v731, %v739
        %v741 = vadd.f32 %v740, 1.1283791
        %v742 = vmul.f32 %v689, %v741
        %v743 = vmul.f32 %v731, 3.8918573e-05
        %v744 = vadd.f32 %v743, 0.001143296
        %v745 = vmul.f32 %v731, %v744
        %v746 = vadd.f32 %v745, 0.014752088
        %v747 = vmul.f32 %v731, %v746
        %v748 = vadd.f32 %v747, 0.112945676
        %v749 = vmul.f32 %v731, %v748
        %v750 = vadd.f32 %v749, 0.4994258
        %v751 = vmul.f32 %v731, %v750
        %v752 = vadd.f32 %v751, 1.0
        %v753 = vrcp.pop %v752
        %v754 = vmul.f32 %v752, %v753
        %v755 = vsub.f32 1.0, %v754
        %v756 = vmul.f32 %v753, %v755
        %v757 = vadd.f32 %v753, %v756
        %vm758 = vweird.f32 %v752
        %vm759 = vweird.f32 %v753
        %vm760 = vmor %vm758, %vm759
        %v761 = vsel %vm760, %v753, %v757
        %v762 = vand.u32 2147483647, %v752
        %vm763 = vcmp.eq.f32.partialorder %v762, 8.507059e+37
        %v764 = vand.u32 %v752, 2147483648
        %v765 = vor.u32 1.1754944e-38, %v764
        %v766 = vsel %vm763, %v765, %v761
        %v767 = vmul.f32 %v742, %v766
        %v768 = vmin.f32 %v767, 1.0
        %v769 = vmax.f32 %v768, -1.0
        %v770 = vadd.f32 %v729, 1.0
        %v771 = vadd.f32 %v769, 1.0
        %v772 = vmul.f32 %v686, %v770
        %v773 = vmul.f32 %v687, %v771
        %v774 = vld [vmem:[#allocation2 + $0x80] sm:$0xff]
        %v775 = vld [vmem:[#allocation2 + $0x88] sm:$0xff]
        %v776 = vld [vmem:[#allocation2 + $0x90] sm:$0xff]
        %v777 = vld [vmem:[#allocation2 + $0x98] sm:$0xff]
        %v778 = vld [vmem:[#allocation2 + $0x30] sm:$0xff]
        %v779 = vld [vmem:[#allocation2 + $0x38] sm:$0xff]
        %v781 = vsel %vm510, %v772, 0
        %v784 = vsel %vm510, %v773, 0
        %786 = vmatpush.msra.mxu0 0.0
        %787 = vmatpush.msra.mxu0 0.0
        %788 = vmatpush.msra.mxu0 0.0
        %789 = vmatpush.msra.mxu0 0.0
        %790 = vmatpush.msra.mxu0 0.0
        %791 = vmatpush.msra.mxu0 0.0
        %792 = vmatpush.msra.mxu0 0.0
        %793 = vmatpush.msra.mxu0 0.0
        %794 = vmatpush.msra.mxu0 0.0
        %795 = vmatpush.msra.mxu0 0.0
        %796 = vmatpush.msra.mxu0 0.0
        %797 = vmatpush.msra.mxu0 0.0
        %798 = vmatpush.msra.mxu0 %v777
        %799 = vmatpush.msra.mxu0 %v776
        %800 = vmatpush.msra.mxu0 %v775
        %801 = vmatpush.msra.mxu0 %v774
        %802 = vmatmul.f32.gmra.mxu0 %v781
        %v803 = vpop.f32.mrf.mxu0
        %v804 = vadd.f32 %v778, %v803
        %805 = vmatmul.f32.gmra.mxu0 %v784
        %v806 = vpop.f32.mrf.mxu0
        %v807 = vadd.f32 %v779, %v806
        %808 = vdwg.mxu0
        %v809 = vadd.f32 %v648, %v804
        %v810 = vadd.f32 %v649, %v807
        %811 = vst.msk [vmem:[%s160] sm:$0xff] %vm167, %v809
        %812 = vst.msk [vmem:[%s160 + $0x8] sm:$0xff] %vm167, %v810
        %p813 = scmp.lt.s32.totalorder %s14, 1
        %s814 = scalar_select %p813, %s14, 1
        %s815 = smul.addr %s814, 2
        %s816 = smul.addr %s815, 8
        %s817 = scalar_lea.vmem %s2, %s816
        // Predicated region
        $region33: #{tpu_custom_call.1} parent=27 // pred_check
          %p818 = pneg %p79
        $region34: #{tpu_custom_call.1} parent=27 // pred_check_branch
          %820 = sbr.rel (%p818) target = $region36
        $region35: #{tpu_custom_call.1} parent=27 // pred_region
          _
        $region36: #{tpu_custom_call.1} parent=27 // pred_fallthru
          _
      $region28: #{tpu_custom_call.1} parent=5 // pred_fallthru
        _
      %p821 = scmp.le.s32.totalorder 2, %s9
      // Predicated region
      $region37: #{tpu_custom_call.1} parent=5 // pred_check
        %p822 = pneg %p821
      $region38: #{tpu_custom_call.1} parent=5 // pred_check_branch
        %824 = sbr.rel (%p822) target = $region40
      $region39: #{tpu_custom_call.1} parent=5 // pred_region
        %s825 = ssub.s32 %s9, 2
        // Predicated region
        $region41: #{tpu_custom_call.1} parent=39 // pred_check
          %p826 = pneg %p85
        $region42: #{tpu_custom_call.1} parent=39 // pred_check_branch
          %828 = sbr.rel (%p826) target = $region44
        $region43: #{tpu_custom_call.1} parent=39 // pred_region
          %p829 = scmp.lt.s32.totalorder %s15, 1
          %s830 = scalar_select %p829, %s15, 1
          %s831 = smul.addr %s830, 2
          %s832 = smul.addr %s831, 8
          %s833 = scalar_lea.vmem %s2, %s832
        $region44: #{tpu_custom_call.1} parent=39 // pred_fallthru
          _
      $region40: #{tpu_custom_call.1} parent=5 // pred_fallthru
        _
    $region6: #{tpu_custom_call.1} parent=1 // loop_footer
      %s13 = sadd.s32 1, %s9
    $region7: #{tpu_custom_call.1} parent=1 // loop_footer_branch
      %8 = sbr.rel target = $region3
    $region8: #{tpu_custom_call.1} parent=1 // loop_exit
      _
    %834 = vsyncpa [#allocation3], 1
    %s835 = scalar_lea.sflag [#allocation3], 1
    %836 = vsyncpa %s835, 1

</llo_original>
